<compile_context>
chip_gen: v5e
topology: v5e:2x2
jax: 0.10.0
libtpu: 0.0.40
codegen_flags: <defaults>
</compile_context>

<pallas_src>
import functools
import math

import jax
import jax.numpy as jnp
from jax.experimental import pallas as pl
from jax.experimental.pallas import tpu as pltpu


_MASK_VALUE = -1e30  # stands in for -inf in masked_fill (rows are never fully masked)


# ---------------------------------------------------------------------------
# helpers
# ---------------------------------------------------------------------------
def _pick_tile(dim, candidates):
    """Largest candidate that evenly divides `dim`, else the full dim (always legal)."""
    for c in candidates:
        if dim % c == 0:
            return c
    return dim


# ---------------------------------------------------------------------------
# LayerNorm kernel
# ---------------------------------------------------------------------------
def _layernorm_kernel(x_ref, g_ref, b_ref, o_ref, *, eps):
    x = x_ref[...].astype(jnp.float32)                    # (tm, D)
    mean = jnp.mean(x, axis=-1, keepdims=True)
    xc = x - mean
    var = jnp.mean(xc * xc, axis=-1, keepdims=True)
    y = xc * jax.lax.rsqrt(var + eps)
    o_ref[...] = (y * g_ref[...] + b_ref[...]).astype(o_ref.dtype)


def layer_norm(x, gamma, beta, *, eps=1e-5):
    M, D = x.shape
    tm = _pick_tile(M, (256, 128, 64, 32, 16, 8))
    g2 = gamma.reshape(1, D)
    b2 = beta.reshape(1, D)
    return pl.pallas_call(
        functools.partial(_layernorm_kernel, eps=eps),
        out_shape=jax.ShapeDtypeStruct((M, D), x.dtype),
        grid_spec=pltpu.PrefetchScalarGridSpec(
            num_scalar_prefetch=0,
            grid=(M // tm,),
            in_specs=[
                pl.BlockSpec((tm, D), lambda i: (i, 0)),
                pl.BlockSpec((1, D), lambda i: (0, 0)),
                pl.BlockSpec((1, D), lambda i: (0, 0)),
            ],
            out_specs=pl.BlockSpec((tm, D), lambda i: (i, 0)),
        ),
        compiler_params=pltpu.CompilerParams(dimension_semantics=("parallel",)),
    )(x, g2, b2)


# ---------------------------------------------------------------------------
# GEMM kernel with fused bias / ReLU / residual epilogue
# ---------------------------------------------------------------------------
def _linear_kernel(x_ref, w_ref, b_ref, *rest, activation, has_residual):
    if has_residual:
        res_ref, o_ref, acc_ref = rest
    else:
        o_ref, acc_ref = rest
    k = pl.program_id(2)

    @pl.when(k == 0)
    def _init():
        acc_ref[...] = jnp.zeros_like(acc_ref)

    acc_ref[...] += jnp.dot(x_ref[...], w_ref[...],
                            preferred_element_type=jnp.float32)

    @pl.when(k == pl.num_programs(2) - 1)
    def _finish():
        out = acc_ref[...] + b_ref[...].astype(jnp.float32)
        if activation == "relu":
            out = jnp.maximum(out, 0.0)
        if has_residual:
            out = out + res_ref[...].astype(jnp.float32)
        o_ref[...] = out.astype(o_ref.dtype)


def linear(x, w, b, *, activation=None, residual=None):
    """x: (M, K), w: (K, N), b: (N,) -> (M, N) = act(x @ w + b) [+ residual]."""
    M, K = x.shape
    K2, N = w.shape
    assert K == K2
    tm = _pick_tile(M, (256, 128, 64, 32, 16, 8))
    tn = _pick_tile(N, (512, 256, 128))      # lane-dense output slabs
    tk = _pick_tile(K, (512, 256, 128))
    b2 = b.reshape(1, N)

    has_res = residual is not None
    kernel = functools.partial(_linear_kernel, activation=activation,
                               has_residual=has_res)

    in_specs = [
        pl.BlockSpec((tm, tk), lambda i, j, kk: (i, kk)),
        pl.BlockSpec((tk, tn), lambda i, j, kk: (kk, j)),
        pl.BlockSpec((1, tn), lambda i, j, kk: (0, j)),
    ]
    inputs = [x, w, b2]
    if has_res:
        in_specs.append(pl.BlockSpec((tm, tn), lambda i, j, kk: (i, j)))
        inputs.append(residual)

    return pl.pallas_call(
        kernel,
        out_shape=jax.ShapeDtypeStruct((M, N), x.dtype),
        grid_spec=pltpu.PrefetchScalarGridSpec(
            num_scalar_prefetch=0,
            grid=(M // tm, N // tn, K // tk),
            in_specs=in_specs,
            out_specs=pl.BlockSpec((tm, tn), lambda i, j, kk: (i, j)),
            scratch_shapes=[pltpu.VMEM((tm, tn), jnp.float32)],
        ),
        compiler_params=pltpu.CompilerParams(
            dimension_semantics=("parallel", "parallel", "arbitrary")),
    )(*inputs)


# ---------------------------------------------------------------------------
# scaled-dot-product attention kernel (one (batch, head) tile per grid step)
# ---------------------------------------------------------------------------
def _attention_kernel(q_ref, k_ref, v_ref, m_ref, o_ref, *, sm_scale):
    q = q_ref[...].astype(jnp.float32)        # (Sq, dk)
    k = k_ref[...].astype(jnp.float32)        # (Skv, dk)
    v = v_ref[...].astype(jnp.float32)        # (Skv, dk)
    m = m_ref[...]                            # (Sq, Skv)

    s = jax.lax.dot_general(q, k, (((1,), (1,)), ((), ())),
                            preferred_element_type=jnp.float32) * sm_scale
    s = jnp.where(m == 0.0, _MASK_VALUE, s)   # masked_fill(mask == 0, -inf)
    s_max = jnp.max(s, axis=-1, keepdims=True)
    p = jnp.exp(s - s_max)
    p = p / jnp.sum(p, axis=-1, keepdims=True)
    o = jnp.dot(p, v, preferred_element_type=jnp.float32)
    o_ref[...] = o.astype(o_ref.dtype)


def attention(q, k, v, mask, *, sm_scale):
    """q: (B,h,Sq,dk), k/v: (B,h,Skv,dk), mask: (B,Sq,Skv) -> (B,h,Sq,dk)."""
    B, h, Sq, dk = q.shape
    _, _, Skv, _ = k.shape
    # TODO(synk): for long sequences, tile the KV axis with online softmax (flash-style).
    return pl.pallas_call(
        functools.partial(_attention_kernel, sm_scale=sm_scale),
        out_shape=jax.ShapeDtypeStruct((B, h, Sq, dk), q.dtype),
        grid_spec=pltpu.PrefetchScalarGridSpec(
            num_scalar_prefetch=0,
            grid=(B, h),
            in_specs=[
                pl.BlockSpec((None, None, Sq, dk), lambda b, hh: (b, hh, 0, 0)),
                pl.BlockSpec((None, None, Skv, dk), lambda b, hh: (b, hh, 0, 0)),
                pl.BlockSpec((None, None, Skv, dk), lambda b, hh: (b, hh, 0, 0)),
                pl.BlockSpec((None, Sq, Skv), lambda b, hh: (b, 0, 0)),
            ],
            out_specs=pl.BlockSpec((None, None, Sq, dk), lambda b, hh: (b, hh, 0, 0)),
        ),
        compiler_params=pltpu.CompilerParams(
            dimension_semantics=("parallel", "parallel")),
    )(q, k, v, mask)


# ---------------------------------------------------------------------------
# module composition (matches the PyTorch DecoderBlock forward, eval mode)
# ---------------------------------------------------------------------------
def _mha_with_residual(x_res, x_q, x_kv, mask, p, h):
    B, Sq, D = x_q.shape
    _, Skv, _ = x_kv.shape
    dk = D // h

    q = linear(x_q.reshape(B * Sq, D), p["wq"], p["bq"])
    k = linear(x_kv.reshape(B * Skv, D), p["wk"], p["bk"])
    v = linear(x_kv.reshape(B * Skv, D), p["wv"], p["bv"])

    q = q.reshape(B, Sq, h, dk).transpose(0, 2, 1, 3)
    k = k.reshape(B, Skv, h, dk).transpose(0, 2, 1, 3)
    v = v.reshape(B, Skv, h, dk).transpose(0, 2, 1, 3)

    mask3 = jnp.broadcast_to(mask, (B, 1, Sq, Skv)).reshape(B, Sq, Skv)
    mask3 = mask3.astype(jnp.float32)

    attn = attention(q, k, v, mask3, sm_scale=1.0 / math.sqrt(dk))   # (B,h,Sq,dk)

    # Replicate the reference module exactly: transpose(-1, -2).reshape(B, Sq, D)
    concat = jnp.swapaxes(attn, -1, -2).reshape(B * Sq, D)

    # Wo projection fused with bias + residual add (x + Wo(attn))
    out = linear(concat, p["wo"], p["bo"], residual=x_res.reshape(B * Sq, D))
    return out.reshape(B, Sq, D)


def decoder_block(x, encoder_output, src_mask, tgt_mask, params, *, h):
    B, S, D = x.shape

    # 1) self-attention residual block
    y = layer_norm(x.reshape(B * S, D), params["ln0_g"], params["ln0_b"]).reshape(B, S, D)
    x = _mha_with_residual(x, y, y, tgt_mask, params["self_attn"], h)

    # 2) cross-attention residual block
    y = layer_norm(x.reshape(B * S, D), params["ln1_g"], params["ln1_b"]).reshape(B, S, D)
    x = _mha_with_residual(x, y, encoder_output, src_mask, params["cross_attn"], h)

    # 3) feed-forward residual block (linear1 + ReLU fused; linear2 + residual fused)
    y = layer_norm(x.reshape(B * S, D), params["ln2_g"], params["ln2_b"])
    h1 = linear(y, params["ff_w1"], params["ff_b1"], activation="relu")
    out = linear(h1, params["ff_w2"], params["ff_b2"], residual=x.reshape(B * S, D))
    return out.reshape(B, S, D)


# ---------------------------------------------------------------------------
# pure-JAX reference (same math, for verification)
# ---------------------------------------------------------------------------
def reference_decoder_block(x, enc, src_mask, tgt_mask, params, *, h, eps=1e-5):
    def ln(t, g, b):
        mu = jnp.mean(t, axis=-1, keepdims=True)
        var = jnp.mean((t - mu) ** 2, axis=-1, keepdims=True)
        return (t - mu) / jnp.sqrt(var + eps) * g + b

    def mha(xq, xkv, mask, p):
        B, Sq, D = xq.shape
        _, Skv, _ = xkv.shape
        dk = D // h
        q = (xq @ p["wq"] + p["bq"]).reshape(B, Sq, h, dk).transpose(0, 2, 1, 3)
        k = (xkv @ p["wk"] + p["bk"]).reshape(B, Skv, h, dk).transpose(0, 2, 1, 3)
        v = (xkv @ p["wv"] + p["bv"]).reshape(B, Skv, h, dk).transpose(0, 2, 1, 3)
        s = (q @ jnp.swapaxes(k, -1, -2)) / math.sqrt(dk)
        s = jnp.where(mask == 0, _MASK_VALUE, s)
        a = jax.nn.softmax(s, axis=-1)
        o = a @ v
        o = jnp.swapaxes(o, -1, -2).reshape(B, Sq, D)   # matches reference transpose(-1,-2)
        return o @ p["wo"] + p["bo"]

    y = ln(x, params["ln0_g"], params["ln0_b"])
    x = x + mha(y, y, tgt_mask, params["self_attn"])
    y = ln(x, params["ln1_g"], params["ln1_b"])
    x = x + mha(y, enc, src_mask, params["cross_attn"])
    y = ln(x, params["ln2_g"], params["ln2_b"])
    ff = jnp.maximum(y @ params["ff_w1"] + params["ff_b1"], 0.0) @ params["ff_w2"] + params["ff_b2"]
    return x + ff


# ---------------------------------------------------------------------------
# params
# ---------------------------------------------------------------------------
def init_decoder_params(key, d_model, h, d_ff):
    keys = iter(jax.random.split(key, 32))

    def lin(din, dout):
        w = jax.random.normal(next(keys), (din, dout), jnp.float32) / math.sqrt(din)
        b = jax.random.normal(next(keys), (dout,), jnp.float32) * 0.02
        return w, b

    def attn_params():
        wq, bq = lin(d_model, d_model)
        wk, bk = lin(d_model, d_model)
        wv, bv = lin(d_model, d_model)
        wo, bo = lin(d_model, d_model)
        return dict(wq=wq, bq=bq, wk=wk, bk=bk, wv=wv, bv=bv, wo=wo, bo=bo)

    def ln_params():
        g = 1.0 + 0.1 * jax.random.normal(next(keys), (d_model,), jnp.float32)
        b = 0.1 * jax.random.normal(next(keys), (d_model,), jnp.float32)
        return g, b

    p = {}
    p["self_attn"] = attn_params()
    p["cross_attn"] = attn_params()
    p["ln0_g"], p["ln0_b"] = ln_params()
    p["ln1_g"], p["ln1_b"] = ln_params()
    p["ln2_g"], p["ln2_b"] = ln_params()
    p["ff_w1"], p["ff_b1"] = lin(d_model, d_ff)
    p["ff_w2"], p["ff_b2"] = lin(d_ff, d_model)
    return p


if __name__ == "__main__":
    # Small deterministic config consistent with the module's forward.
    B, S, S_enc = 2, 8, 8
    d_model, h, d_ff = 128, 4, 256

    key = jax.random.PRNGKey(0)
    kx, ke, kp = jax.random.split(key, 3)
    x = jax.random.normal(kx, (B, S, d_model), jnp.float32)
    enc_out = jax.random.normal(ke, (B, S_enc, d_model), jnp.float32)
    params = init_decoder_params(kp, d_model, h, d_ff)

    # tgt_mask: causal; src_mask: all-visible (broadcast over batch and heads).
    tgt_mask = jnp.tril(jnp.ones((S, S), jnp.float32)).reshape(1, 1, S, S)
    src_mask = jnp.ones((1, 1, S, S_enc), jnp.float32)

    decoder = jax.jit(functools.partial(decoder_block, h=h))
    out = decoder(x, enc_out, src_mask, tgt_mask, params)
    out = jax.block_until_ready(out)

    ref = reference_decoder_block(x, enc_out, src_mask, tgt_mask, params, h=h)
    assert out.shape == (B, S, d_model)
    max_err = float(jnp.max(jnp.abs(out - ref)))
    scale = max(float(jnp.max(jnp.abs(ref))), 1.0)
    assert max_err <= 1e-2 * scale, f"max abs err {max_err} (ref scale {scale})"

    print("KERNEL_OK")
</pallas_src>

<mosaic_0001>
module attributes {stable_mosaic.version = 11 : i64} {
  func.func @_linear_kernel(%arg0: i32, %arg1: i32, %arg2: i32, %arg3: memref<16x128xf32, #tpu.memory_space<vmem>>, %arg4: memref<128x128xf32, #tpu.memory_space<vmem>>, %arg5: memref<1x128xf32, #tpu.memory_space<vmem>>, %arg6: memref<16x128xf32, #tpu.memory_space<vmem>>, %arg7: memref<16x128xf32, #tpu.memory_space<vmem>>) attributes {dimension_semantics = [#tpu.dimension_semantics<parallel>, #tpu.dimension_semantics<parallel>, #tpu.dimension_semantics<arbitrary>], iteration_bounds = array<i64: 1, 1, 1>, scalar_prefetch = 0 : i64, scratch_operands = 1 : i64, tpu.core_type = #tpu.core_type<tc>, window_params = [{transform_indices = @transform_0, window_bounds = array<i64: 16, 128>}, {transform_indices = @transform_1, window_bounds = array<i64: 128, 128>}, {transform_indices = @transform_2, window_bounds = array<i64: 1, 128>}, {transform_indices = @transform_3, window_bounds = array<i64: 16, 128>}]} {
    %c0_i32 = arith.constant 0 : i32
    %0 = arith.cmpi eq, %arg2, %c0_i32 : i32
    %1 = arith.extui %0 : i1 to i32
    %c0_i32_0 = arith.constant 0 : i32
    %2 = arith.cmpi ne, %1, %c0_i32_0 : i32
    scf.if %2 {
      %cst_10 = arith.constant 0.000000e+00 : f32
      %12 = vector.broadcast %cst_10 : f32 to vector<16x128xf32>
      %c0_11 = arith.constant 0 : index
      %c0_12 = arith.constant 0 : index
      %13 = vector.load %arg7[%c0_11, %c0_12] : memref<16x128xf32, #tpu.memory_space<vmem>>, vector<16x128xf32>
      tpu.vector_store %arg7[%c0_11, %c0_12], %12 {strides = array<i32>} : memref<16x128xf32, #tpu.memory_space<vmem>>, vector<16x128xf32>,
    } else {
    }
    %c0 = arith.constant 0 : index
    %c0_1 = arith.constant 0 : index
    %3 = vector.load %arg7[%c0, %c0_1] : memref<16x128xf32, #tpu.memory_space<vmem>>, vector<16x128xf32>
    %c0_2 = arith.constant 0 : index
    %c0_3 = arith.constant 0 : index
    %4 = vector.load %arg3[%c0_2, %c0_3] : memref<16x128xf32, #tpu.memory_space<vmem>>, vector<16x128xf32>
    %c0_4 = arith.constant 0 : index
    %c0_5 = arith.constant 0 : index
    %5 = vector.load %arg4[%c0_4, %c0_5] : memref<128x128xf32, #tpu.memory_space<vmem>>, vector<128x128xf32>
    %cst = arith.constant dense<0.000000e+00> : vector<16x128xf32>
    %6 = tpu.matmul %4, %5, %cst {dimension_numbers = #tpu.dot_dimension_numbers<[1], [0], [0], [1], [0, 0, 1, 1], [], []>} : vector<16x128xf32>, vector<128x128xf32>, vector<16x128xf32> -> vector<16x128xf32>
    %7 = arith.addf %3, %6 : vector<16x128xf32>
    %c0_6 = arith.constant 0 : index
    %c0_7 = arith.constant 0 : index
    %8 = vector.load %arg7[%c0_6, %c0_7] : memref<16x128xf32, #tpu.memory_space<vmem>>, vector<16x128xf32>
    tpu.vector_store %arg7[%c0_6, %c0_7], %7 {strides = array<i32>} : memref<16x128xf32, #tpu.memory_space<vmem>>, vector<16x128xf32>,
    %c0_i32_8 = arith.constant 0 : i32
    %9 = arith.cmpi eq, %arg2, %c0_i32_8 : i32
    %10 = arith.extui %9 : i1 to i32
    %c0_i32_9 = arith.constant 0 : i32
    %11 = arith.cmpi ne, %10, %c0_i32_9 : i32
    scf.if %11 {
      %c0_10 = arith.constant 0 : index
      %c0_11 = arith.constant 0 : index
      %12 = vector.load %arg7[%c0_10, %c0_11] : memref<16x128xf32, #tpu.memory_space<vmem>>, vector<16x128xf32>
      %c0_12 = arith.constant 0 : index
      %c0_13 = arith.constant 0 : index
      %13 = vector.load %arg5[%c0_12, %c0_13] : memref<1x128xf32, #tpu.memory_space<vmem>>, vector<1x128xf32>
      %14 = vector.broadcast %13 : vector<1x128xf32> to vector<16x128xf32>
      %15 = arith.addf %12, %14 : vector<16x128xf32>
      %c0_14 = arith.constant 0 : index
      %c0_15 = arith.constant 0 : index
      %16 = vector.load %arg6[%c0_14, %c0_15] : memref<16x128xf32, #tpu.memory_space<vmem>>, vector<16x128xf32>
      tpu.vector_store %arg6[%c0_14, %c0_15], %15 {strides = array<i32>} : memref<16x128xf32, #tpu.memory_space<vmem>>, vector<16x128xf32>,
    } else {
    }
    return
  }
  func.func @transform_0(%arg0: i32, %arg1: i32, %arg2: i32) -> (i32, i32) {
    %c0_i32 = arith.constant 0 : i32
    return %arg0, %arg2 : i32, i32
  }
  func.func @transform_1(%arg0: i32, %arg1: i32, %arg2: i32) -> (i32, i32) {
    %c0_i32 = arith.constant 0 : i32
    return %arg2, %arg1 : i32, i32
  }
  func.func @transform_2(%arg0: i32, %arg1: i32, %arg2: i32) -> (i32, i32) {
    %c0_i32 = arith.constant 0 : i32
    %c0_i32_0 = arith.constant 0 : i32
    return %c0_i32, %arg1 : i32, i32
  }
  func.func @transform_3(%arg0: i32, %arg1: i32, %arg2: i32) -> (i32, i32) {
    %c0_i32 = arith.constant 0 : i32
    return %arg0, %arg1 : i32, i32
  }
}

module attributes {stable_mosaic.version = 11 : i64} {
  func.func @_layernorm_kernel(%arg0: i32, %arg1: memref<16x128xf32, #tpu.memory_space<vmem>>, %arg2: memref<1x128xf32, #tpu.memory_space<vmem>>, %arg3: memref<1x128xf32, #tpu.memory_space<vmem>>, %arg4: memref<16x128xf32, #tpu.memory_space<vmem>>) attributes {dimension_semantics = [#tpu.dimension_semantics<parallel>], iteration_bounds = array<i64: 1>, scalar_prefetch = 0 : i64, scratch_operands = 0 : i64, tpu.core_type = #tpu.core_type<tc>, window_params = [{transform_indices = @transform_0, window_bounds = array<i64: 16, 128>}, {pipeline_mode = #tpu.pipeline_mode<synchronous>, transform_indices = @transform_1, window_bounds = array<i64: 1, 128>}, {pipeline_mode = #tpu.pipeline_mode<synchronous>, transform_indices = @transform_2, window_bounds = array<i64: 1, 128>}, {transform_indices = @transform_3, window_bounds = array<i64: 16, 128>}]} {
    %c0 = arith.constant 0 : index
    %c0_0 = arith.constant 0 : index
    %0 = vector.load %arg1[%c0, %c0_0] : memref<16x128xf32, #tpu.memory_space<vmem>>, vector<16x128xf32>
    %cst = arith.constant dense<0.000000e+00> : vector<16xf32>
    %1 = vector.multi_reduction <add>, %0, %cst [1] : vector<16x128xf32> to vector<16xf32>
    %2 = vector.shape_cast %1 : vector<16xf32> to vector<16x1xf32>
    %cst_1 = arith.constant 1.280000e+02 : f32
    %3 = vector.broadcast %cst_1 : f32 to vector<16x1xf32>
    %4 = arith.divf %2, %3 : vector<16x1xf32>
    %5 = vector.broadcast %4 : vector<16x1xf32> to vector<16x128xf32>
    %6 = arith.subf %0, %5 : vector<16x128xf32>
    %7 = arith.mulf %6, %6 : vector<16x128xf32>
    %cst_2 = arith.constant dense<0.000000e+00> : vector<16xf32>
    %8 = vector.multi_reduction <add>, %7, %cst_2 [1] : vector<16x128xf32> to vector<16xf32>
    %9 = vector.shape_cast %8 : vector<16xf32> to vector<16x1xf32>
    %cst_3 = arith.constant 1.280000e+02 : f32
    %10 = vector.broadcast %cst_3 : f32 to vector<16x1xf32>
    %11 = arith.divf %9, %10 : vector<16x1xf32>
    %cst_4 = arith.constant 9.99999974E-6 : f32
    %12 = vector.broadcast %cst_4 : f32 to vector<16x1xf32>
    %13 = arith.addf %11, %12 : vector<16x1xf32>
    %14 = math.rsqrt %13 : vector<16x1xf32>
    %15 = vector.broadcast %14 : vector<16x1xf32> to vector<16x128xf32>
    %16 = arith.mulf %6, %15 : vector<16x128xf32>
    %c0_5 = arith.constant 0 : index
    %c0_6 = arith.constant 0 : index
    %17 = vector.load %arg2[%c0_5, %c0_6] : memref<1x128xf32, #tpu.memory_space<vmem>>, vector<1x128xf32>
    %18 = vector.broadcast %17 : vector<1x128xf32> to vector<16x128xf32>
    %19 = arith.mulf %16, %18 : vector<16x128xf32>
    %c0_7 = arith.constant 0 : index
    %c0_8 = arith.constant 0 : index
    %20 = vector.load %arg3[%c0_7, %c0_8] : memref<1x128xf32, #tpu.memory_space<vmem>>, vector<1x128xf32>
    %21 = vector.broadcast %20 : vector<1x128xf32> to vector<16x128xf32>
    %22 = arith.addf %19, %21 : vector<16x128xf32>
    %c0_9 = arith.constant 0 : index
    %c0_10 = arith.constant 0 : index
    %23 = vector.load %arg4[%c0_9, %c0_10] : memref<16x128xf32, #tpu.memory_space<vmem>>, vector<16x128xf32>
    tpu.vector_store %arg4[%c0_9, %c0_10], %22 {strides = array<i32>} : memref<16x128xf32, #tpu.memory_space<vmem>>, vector<16x128xf32>,
    return
  }
  func.func @transform_0(%arg0: i32) -> (i32, i32) {
    %c0_i32 = arith.constant 0 : i32
    %c0_i32_0 = arith.constant 0 : i32
    return %arg0, %c0_i32 : i32, i32
  }
  func.func @transform_1(%arg0: i32) -> (i32, i32) {
    %c0_i32 = arith.constant 0 : i32
    %c0_i32_0 = arith.constant 0 : i32
    %c0_i32_1 = arith.constant 0 : i32
    return %c0_i32, %c0_i32_0 : i32, i32
  }
  func.func @transform_2(%arg0: i32) -> (i32, i32) {
    %c0_i32 = arith.constant 0 : i32
    %c0_i32_0 = arith.constant 0 : i32
    %c0_i32_1 = arith.constant 0 : i32
    return %c0_i32, %c0_i32_0 : i32, i32
  }
  func.func @transform_3(%arg0: i32) -> (i32, i32) {
    %c0_i32 = arith.constant 0 : i32
    %c0_i32_0 = arith.constant 0 : i32
    return %arg0, %c0_i32 : i32, i32
  }
}

module attributes {stable_mosaic.version = 11 : i64} {
  func.func @_linear_kernel(%arg0: i32, %arg1: i32, %arg2: i32, %arg3: memref<16x128xf32, #tpu.memory_space<vmem>>, %arg4: memref<128x128xf32, #tpu.memory_space<vmem>>, %arg5: memref<1x128xf32, #tpu.memory_space<vmem>>, %arg6: memref<16x128xf32, #tpu.memory_space<vmem>>, %arg7: memref<16x128xf32, #tpu.memory_space<vmem>>) attributes {dimension_semantics = [#tpu.dimension_semantics<parallel>, #tpu.dimension_semantics<parallel>, #tpu.dimension_semantics<arbitrary>], iteration_bounds = array<i64: 1, 1, 1>, scalar_prefetch = 0 : i64, scratch_operands = 1 : i64, tpu.core_type = #tpu.core_type<tc>, window_params = [{transform_indices = @transform_0, window_bounds = array<i64: 16, 128>}, {transform_indices = @transform_1, window_bounds = array<i64: 128, 128>}, {transform_indices = @transform_2, window_bounds = array<i64: 1, 128>}, {transform_indices = @transform_3, window_bounds = array<i64: 16, 128>}]} {
    %c0_i32 = arith.constant 0 : i32
    %0 = arith.cmpi eq, %arg2, %c0_i32 : i32
    %1 = arith.extui %0 : i1 to i32
    %c0_i32_0 = arith.constant 0 : i32
    %2 = arith.cmpi ne, %1, %c0_i32_0 : i32
    scf.if %2 {
      %cst_10 = arith.constant 0.000000e+00 : f32
      %12 = vector.broadcast %cst_10 : f32 to vector<16x128xf32>
      %c0_11 = arith.constant 0 : index
      %c0_12 = arith.constant 0 : index
      %13 = vector.load %arg7[%c0_11, %c0_12] : memref<16x128xf32, #tpu.memory_space<vmem>>, vector<16x128xf32>
      tpu.vector_store %arg7[%c0_11, %c0_12], %12 {strides = array<i32>} : memref<16x128xf32, #tpu.memory_space<vmem>>, vector<16x128xf32>,
    } else {
    }
    %c0 = arith.constant 0 : index
    %c0_1 = arith.constant 0 : index
    %3 = vector.load %arg7[%c0, %c0_1] : memref<16x128xf32, #tpu.memory_space<vmem>>, vector<16x128xf32>
    %c0_2 = arith.constant 0 : index
    %c0_3 = arith.constant 0 : index
    %4 = vector.load %arg3[%c0_2, %c0_3] : memref<16x128xf32, #tpu.memory_space<vmem>>, vector<16x128xf32>
    %c0_4 = arith.constant 0 : index
    %c0_5 = arith.constant 0 : index
    %5 = vector.load %arg4[%c0_4, %c0_5] : memref<128x128xf32, #tpu.memory_space<vmem>>, vector<128x128xf32>
    %cst = arith.constant dense<0.000000e+00> : vector<16x128xf32>
    %6 = tpu.matmul %4, %5, %cst {dimension_numbers = #tpu.dot_dimension_numbers<[1], [0], [0], [1], [0, 0, 1, 1], [], []>} : vector<16x128xf32>, vector<128x128xf32>, vector<16x128xf32> -> vector<16x128xf32>
    %7 = arith.addf %3, %6 : vector<16x128xf32>
    %c0_6 = arith.constant 0 : index
    %c0_7 = arith.constant 0 : index
    %8 = vector.load %arg7[%c0_6, %c0_7] : memref<16x128xf32, #tpu.memory_space<vmem>>, vector<16x128xf32>
    tpu.vector_store %arg7[%c0_6, %c0_7], %7 {strides = array<i32>} : memref<16x128xf32, #tpu.memory_space<vmem>>, vector<16x128xf32>,
    %c0_i32_8 = arith.constant 0 : i32
    %9 = arith.cmpi eq, %arg2, %c0_i32_8 : i32
    %10 = arith.extui %9 : i1 to i32
    %c0_i32_9 = arith.constant 0 : i32
    %11 = arith.cmpi ne, %10, %c0_i32_9 : i32
    scf.if %11 {
      %c0_10 = arith.constant 0 : index
      %c0_11 = arith.constant 0 : index
      %12 = vector.load %arg7[%c0_10, %c0_11] : memref<16x128xf32, #tpu.memory_space<vmem>>, vector<16x128xf32>
      %c0_12 = arith.constant 0 : index
      %c0_13 = arith.constant 0 : index
      %13 = vector.load %arg5[%c0_12, %c0_13] : memref<1x128xf32, #tpu.memory_space<vmem>>, vector<1x128xf32>
      %14 = vector.broadcast %13 : vector<1x128xf32> to vector<16x128xf32>
      %15 = arith.addf %12, %14 : vector<16x128xf32>
      %c0_14 = arith.constant 0 : index
      %c0_15 = arith.constant 0 : index
      %16 = vector.load %arg6[%c0_14, %c0_15] : memref<16x128xf32, #tpu.memory_space<vmem>>, vector<16x128xf32>
      tpu.vector_store %arg6[%c0_14, %c0_15], %15 {strides = array<i32>} : memref<16x128xf32, #tpu.memory_space<vmem>>, vector<16x128xf32>,
    } else {
    }
    return
  }
  func.func @transform_0(%arg0: i32, %arg1: i32, %arg2: i32) -> (i32, i32) {
    %c0_i32 = arith.constant 0 : i32
    return %arg0, %arg2 : i32, i32
  }
  func.func @transform_1(%arg0: i32, %arg1: i32, %arg2: i32) -> (i32, i32) {
    %c0_i32 = arith.constant 0 : i32
    return %arg2, %arg1 : i32, i32
  }
  func.func @transform_2(%arg0: i32, %arg1: i32, %arg2: i32) -> (i32, i32) {
    %c0_i32 = arith.constant 0 : i32
    %c0_i32_0 = arith.constant 0 : i32
    return %c0_i32, %arg1 : i32, i32
  }
  func.func @transform_3(%arg0: i32, %arg1: i32, %arg2: i32) -> (i32, i32) {
    %c0_i32 = arith.constant 0 : i32
    return %arg0, %arg1 : i32, i32
  }
}

module attributes {stable_mosaic.version = 11 : i64} {
  func.func @_attention_kernel(%arg0: i32, %arg1: i32, %arg2: memref<1x1x8x32xf32, #tpu.memory_space<vmem>>, %arg3: memref<1x1x8x32xf32, #tpu.memory_space<vmem>>, %arg4: memref<1x1x8x32xf32, #tpu.memory_space<vmem>>, %arg5: memref<1x8x8xf32, #tpu.memory_space<vmem>>, %arg6: memref<1x1x8x32xf32, #tpu.memory_space<vmem>>) attributes {dimension_semantics = [#tpu.dimension_semantics<parallel>, #tpu.dimension_semantics<parallel>], iteration_bounds = array<i64: 2, 4>, scalar_prefetch = 0 : i64, scratch_operands = 0 : i64, tpu.core_type = #tpu.core_type<tc>, window_params = [{transform_indices = @transform_0, window_bounds = array<i64: 1, 1, 8, 32>}, {transform_indices = @transform_1, window_bounds = array<i64: 1, 1, 8, 32>}, {transform_indices = @transform_2, window_bounds = array<i64: 1, 1, 8, 32>}, {transform_indices = @transform_3, window_bounds = array<i64: 1, 8, 8>}, {transform_indices = @transform_4, window_bounds = array<i64: 1, 1, 8, 32>}]} {
    %c0 = arith.constant 0 : index
    %c0_0 = arith.constant 0 : index
    %c0_1 = arith.constant 0 : index
    %c0_2 = arith.constant 0 : index
    %0 = vector.load %arg2[%c0, %c0_0, %c0_1, %c0_2] : memref<1x1x8x32xf32, #tpu.memory_space<vmem>>, vector<1x1x8x32xf32>
    %1 = vector.shape_cast %0 : vector<1x1x8x32xf32> to vector<8x32xf32>
    %c0_3 = arith.constant 0 : index
    %c0_4 = arith.constant 0 : index
    %c0_5 = arith.constant 0 : index
    %c0_6 = arith.constant 0 : index
    %2 = vector.load %arg3[%c0_3, %c0_4, %c0_5, %c0_6] : memref<1x1x8x32xf32, #tpu.memory_space<vmem>>, vector<1x1x8x32xf32>
    %3 = vector.shape_cast %2 : vector<1x1x8x32xf32> to vector<8x32xf32>
    %c0_7 = arith.constant 0 : index
    %c0_8 = arith.constant 0 : index
    %c0_9 = arith.constant 0 : index
    %c0_10 = arith.constant 0 : index
    %4 = vector.load %arg4[%c0_7, %c0_8, %c0_9, %c0_10] : memref<1x1x8x32xf32, #tpu.memory_space<vmem>>, vector<1x1x8x32xf32>
    %5 = vector.shape_cast %4 : vector<1x1x8x32xf32> to vector<8x32xf32>
    %c0_11 = arith.constant 0 : index
    %c0_12 = arith.constant 0 : index
    %c0_13 = arith.constant 0 : index
    %6 = vector.load %arg5[%c0_11, %c0_12, %c0_13] : memref<1x8x8xf32, #tpu.memory_space<vmem>>, vector<1x8x8xf32>
    %7 = vector.shape_cast %6 : vector<1x8x8xf32> to vector<8x8xf32>
    %cst = arith.constant dense<0.000000e+00> : vector<8x8xf32>
    %8 = tpu.matmul %1, %3, %cst {dimension_numbers = #tpu.dot_dimension_numbers<[1], [1], [0], [0], [0, 0, 1, 0], [], []>} : vector<8x32xf32>, vector<8x32xf32>, vector<8x8xf32> -> vector<8x8xf32>
    %cst_14 = arith.constant 0.176776692 : f32
    %9 = vector.broadcast %cst_14 : f32 to vector<8x8xf32>
    %10 = arith.mulf %8, %9 : vector<8x8xf32>
    %cst_15 = arith.constant 0.000000e+00 : f32
    %11 = vector.broadcast %cst_15 : f32 to vector<8x8xf32>
    %12 = arith.cmpf oeq, %7, %11 : vector<8x8xf32>
    %cst_16 = arith.constant -1.000000e+30 : f32
    %13 = vector.broadcast %cst_16 : f32 to vector<8x8xf32>
    %14 = arith.select %12, %13, %10 : vector<8x8xi1>, vector<8x8xf32>
    %cst_17 = arith.constant dense<0xFF800000> : vector<8xf32>
    %15 = vector.multi_reduction <maximumf>, %14, %cst_17 [1] : vector<8x8xf32> to vector<8xf32>
    %16 = vector.shape_cast %15 : vector<8xf32> to vector<8x1xf32>
    %17 = vector.broadcast %16 : vector<8x1xf32> to vector<8x8xf32>
    %18 = arith.subf %14, %17 : vector<8x8xf32>
    %19 = math.exp %18 : vector<8x8xf32>
    %cst_18 = arith.constant dense<0.000000e+00> : vector<8xf32>
    %20 = vector.multi_reduction <add>, %19, %cst_18 [1] : vector<8x8xf32> to vector<8xf32>
    %21 = vector.shape_cast %20 : vector<8xf32> to vector<8x1xf32>
    %22 = vector.broadcast %21 : vector<8x1xf32> to vector<8x8xf32>
    %23 = arith.divf %19, %22 : vector<8x8xf32>
    %cst_19 = arith.constant dense<0.000000e+00> : vector<8x32xf32>
    %24 = tpu.matmul %23, %5, %cst_19 {dimension_numbers = #tpu.dot_dimension_numbers<[1], [0], [0], [1], [0, 0, 1, 1], [], []>} : vector<8x8xf32>, vector<8x32xf32>, vector<8x32xf32> -> vector<8x32xf32>
    %c0_20 = arith.constant 0 : index
    %c0_21 = arith.constant 0 : index
    %c0_22 = arith.constant 0 : index
    %c0_23 = arith.constant 0 : index
    %25 = vector.load %arg6[%c0_20, %c0_21, %c0_22, %c0_23] : memref<1x1x8x32xf32, #tpu.memory_space<vmem>>, vector<1x1x8x32xf32>
    %26 = vector.shape_cast %25 : vector<1x1x8x32xf32> to vector<8x32xf32>
    %27 = vector.shape_cast %24 : vector<8x32xf32> to vector<1x1x8x32xf32>
    tpu.vector_store %arg6[%c0_20, %c0_21, %c0_22, %c0_23], %27 {strides = array<i32>} : memref<1x1x8x32xf32, #tpu.memory_space<vmem>>, vector<1x1x8x32xf32>,
    return
  }
  func.func @transform_0(%arg0: i32, %arg1: i32) -> (i32, i32, i32, i32) {
    %c0_i32 = arith.constant 0 : i32
    %c0_i32_0 = arith.constant 0 : i32
    %c0_i32_1 = arith.constant 0 : i32
    return %arg0, %arg1, %c0_i32, %c0_i32_0 : i32, i32, i32, i32
  }
  func.func @transform_1(%arg0: i32, %arg1: i32) -> (i32, i32, i32, i32) {
    %c0_i32 = arith.constant 0 : i32
    %c0_i32_0 = arith.constant 0 : i32
    %c0_i32_1 = arith.constant 0 : i32
    return %arg0, %arg1, %c0_i32, %c0_i32_0 : i32, i32, i32, i32
  }
  func.func @transform_2(%arg0: i32, %arg1: i32) -> (i32, i32, i32, i32) {
    %c0_i32 = arith.constant 0 : i32
    %c0_i32_0 = arith.constant 0 : i32
    %c0_i32_1 = arith.constant 0 : i32
    return %arg0, %arg1, %c0_i32, %c0_i32_0 : i32, i32, i32, i32
  }
  func.func @transform_3(%arg0: i32, %arg1: i32) -> (i32, i32, i32) {
    %c0_i32 = arith.constant 0 : i32
    %c0_i32_0 = arith.constant 0 : i32
    %c0_i32_1 = arith.constant 0 : i32
    return %arg0, %c0_i32, %c0_i32_0 : i32, i32, i32
  }
  func.func @transform_4(%arg0: i32, %arg1: i32) -> (i32, i32, i32, i32) {
    %c0_i32 = arith.constant 0 : i32
    %c0_i32_0 = arith.constant 0 : i32
    %c0_i32_1 = arith.constant 0 : i32
    return %arg0, %arg1, %c0_i32, %c0_i32_0 : i32, i32, i32, i32
  }
}

module attributes {stable_mosaic.version = 11 : i64} {
  func.func @_linear_kernel(%arg0: i32, %arg1: i32, %arg2: i32, %arg3: memref<16x256xf32, #tpu.memory_space<vmem>>, %arg4: memref<256x128xf32, #tpu.memory_space<vmem>>, %arg5: memref<1x128xf32, #tpu.memory_space<vmem>>, %arg6: memref<16x128xf32, #tpu.memory_space<vmem>>, %arg7: memref<16x128xf32, #tpu.memory_space<vmem>>, %arg8: memref<16x128xf32, #tpu.memory_space<vmem>>) attributes {dimension_semantics = [#tpu.dimension_semantics<parallel>, #tpu.dimension_semantics<parallel>, #tpu.dimension_semantics<arbitrary>], iteration_bounds = array<i64: 1, 1, 1>, scalar_prefetch = 0 : i64, scratch_operands = 1 : i64, tpu.core_type = #tpu.core_type<tc>, window_params = [{transform_indices = @transform_0, window_bounds = array<i64: 16, 256>}, {transform_indices = @transform_1, window_bounds = array<i64: 256, 128>}, {transform_indices = @transform_2, window_bounds = array<i64: 1, 128>}, {transform_indices = @transform_3, window_bounds = array<i64: 16, 128>}, {transform_indices = @transform_4, window_bounds = array<i64: 16, 128>}]} {
    %c0_i32 = arith.constant 0 : i32
    %0 = arith.cmpi eq, %arg2, %c0_i32 : i32
    %1 = arith.extui %0 : i1 to i32
    %c0_i32_0 = arith.constant 0 : i32
    %2 = arith.cmpi ne, %1, %c0_i32_0 : i32
    scf.if %2 {
      %cst_10 = arith.constant 0.000000e+00 : f32
      %12 = vector.broadcast %cst_10 : f32 to vector<16x128xf32>
      %c0_11 = arith.constant 0 : index
      %c0_12 = arith.constant 0 : index
      %13 = vector.load %arg8[%c0_11, %c0_12] : memref<16x128xf32, #tpu.memory_space<vmem>>, vector<16x128xf32>
      tpu.vector_store %arg8[%c0_11, %c0_12], %12 {strides = array<i32>} : memref<16x128xf32, #tpu.memory_space<vmem>>, vector<16x128xf32>,
    } else {
    }
    %c0 = arith.constant 0 : index
    %c0_1 = arith.constant 0 : index
    %3 = vector.load %arg8[%c0, %c0_1] : memref<16x128xf32, #tpu.memory_space<vmem>>, vector<16x128xf32>
    %c0_2 = arith.constant 0 : index
    %c0_3 = arith.constant 0 : index
    %4 = vector.load %arg3[%c0_2, %c0_3] : memref<16x256xf32, #tpu.memory_space<vmem>>, vector<16x256xf32>
    %c0_4 = arith.constant 0 : index
    %c0_5 = arith.constant 0 : index
    %5 = vector.load %arg4[%c0_4, %c0_5] : memref<256x128xf32, #tpu.memory_space<vmem>>, vector<256x128xf32>
    %cst = arith.constant dense<0.000000e+00> : vector<16x128xf32>
    %6 = tpu.matmul %4, %5, %cst {dimension_numbers = #tpu.dot_dimension_numbers<[1], [0], [0], [1], [0, 0, 1, 1], [], []>} : vector<16x256xf32>, vector<256x128xf32>, vector<16x128xf32> -> vector<16x128xf32>
    %7 = arith.addf %3, %6 : vector<16x128xf32>
    %c0_6 = arith.constant 0 : index
    %c0_7 = arith.constant 0 : index
    %8 = vector.load %arg8[%c0_6, %c0_7] : memref<16x128xf32, #tpu.memory_space<vmem>>, vector<16x128xf32>
    tpu.vector_store %arg8[%c0_6, %c0_7], %7 {strides = array<i32>} : memref<16x128xf32, #tpu.memory_space<vmem>>, vector<16x128xf32>,
    %c0_i32_8 = arith.constant 0 : i32
    %9 = arith.cmpi eq, %arg2, %c0_i32_8 : i32
    %10 = arith.extui %9 : i1 to i32
    %c0_i32_9 = arith.constant 0 : i32
    %11 = arith.cmpi ne, %10, %c0_i32_9 : i32
    scf.if %11 {
      %c0_10 = arith.constant 0 : index
      %c0_11 = arith.constant 0 : index
      %12 = vector.load %arg8[%c0_10, %c0_11] : memref<16x128xf32, #tpu.memory_space<vmem>>, vector<16x128xf32>
      %c0_12 = arith.constant 0 : index
      %c0_13 = arith.constant 0 : index
      %13 = vector.load %arg5[%c0_12, %c0_13] : memref<1x128xf32, #tpu.memory_space<vmem>>, vector<1x128xf32>
      %14 = vector.broadcast %13 : vector<1x128xf32> to vector<16x128xf32>
      %15 = arith.addf %12, %14 : vector<16x128xf32>
      %c0_14 = arith.constant 0 : index
      %c0_15 = arith.constant 0 : index
      %16 = vector.load %arg6[%c0_14, %c0_15] : memref<16x128xf32, #tpu.memory_space<vmem>>, vector<16x128xf32>
      %17 = arith.addf %15, %16 : vector<16x128xf32>
      %c0_16 = arith.constant 0 : index
      %c0_17 = arith.constant 0 : index
      %18 = vector.load %arg7[%c0_16, %c0_17] : memref<16x128xf32, #tpu.memory_space<vmem>>, vector<16x128xf32>
      tpu.vector_store %arg7[%c0_16, %c0_17], %17 {strides = array<i32>} : memref<16x128xf32, #tpu.memory_space<vmem>>, vector<16x128xf32>,
    } else {
    }
    return
  }
  func.func @transform_0(%arg0: i32, %arg1: i32, %arg2: i32) -> (i32, i32) {
    %c0_i32 = arith.constant 0 : i32
    return %arg0, %arg2 : i32, i32
  }
  func.func @transform_1(%arg0: i32, %arg1: i32, %arg2: i32) -> (i32, i32) {
    %c0_i32 = arith.constant 0 : i32
    return %arg2, %arg1 : i32, i32
  }
  func.func @transform_2(%arg0: i32, %arg1: i32, %arg2: i32) -> (i32, i32) {
    %c0_i32 = arith.constant 0 : i32
    %c0_i32_0 = arith.constant 0 : i32
    return %c0_i32, %arg1 : i32, i32
  }
  func.func @transform_3(%arg0: i32, %arg1: i32, %arg2: i32) -> (i32, i32) {
    %c0_i32 = arith.constant 0 : i32
    return %arg0, %arg1 : i32, i32
  }
  func.func @transform_4(%arg0: i32, %arg1: i32, %arg2: i32) -> (i32, i32) {
    %c0_i32 = arith.constant 0 : i32
    return %arg0, %arg1 : i32, i32
  }
}

module attributes {stable_mosaic.version = 11 : i64} {
  func.func @_linear_kernel(%arg0: i32, %arg1: i32, %arg2: i32, %arg3: memref<16x128xf32, #tpu.memory_space<vmem>>, %arg4: memref<128x256xf32, #tpu.memory_space<vmem>>, %arg5: memref<1x256xf32, #tpu.memory_space<vmem>>, %arg6: memref<16x256xf32, #tpu.memory_space<vmem>>, %arg7: memref<16x256xf32, #tpu.memory_space<vmem>>) attributes {dimension_semantics = [#tpu.dimension_semantics<parallel>, #tpu.dimension_semantics<parallel>, #tpu.dimension_semantics<arbitrary>], iteration_bounds = array<i64: 1, 1, 1>, scalar_prefetch = 0 : i64, scratch_operands = 1 : i64, tpu.core_type = #tpu.core_type<tc>, window_params = [{transform_indices = @transform_0, window_bounds = array<i64: 16, 128>}, {transform_indices = @transform_1, window_bounds = array<i64: 128, 256>}, {transform_indices = @transform_2, window_bounds = array<i64: 1, 256>}, {transform_indices = @transform_3, window_bounds = array<i64: 16, 256>}]} {
    %c0_i32 = arith.constant 0 : i32
    %0 = arith.cmpi eq, %arg2, %c0_i32 : i32
    %1 = arith.extui %0 : i1 to i32
    %c0_i32_0 = arith.constant 0 : i32
    %2 = arith.cmpi ne, %1, %c0_i32_0 : i32
    scf.if %2 {
      %cst_10 = arith.constant 0.000000e+00 : f32
      %12 = vector.broadcast %cst_10 : f32 to vector<16x256xf32>
      %c0_11 = arith.constant 0 : index
      %c0_12 = arith.constant 0 : index
      %13 = vector.load %arg7[%c0_11, %c0_12] : memref<16x256xf32, #tpu.memory_space<vmem>>, vector<16x256xf32>
      tpu.vector_store %arg7[%c0_11, %c0_12], %12 {strides = array<i32>} : memref<16x256xf32, #tpu.memory_space<vmem>>, vector<16x256xf32>,
    } else {
    }
    %c0 = arith.constant 0 : index
    %c0_1 = arith.constant 0 : index
    %3 = vector.load %arg7[%c0, %c0_1] : memref<16x256xf32, #tpu.memory_space<vmem>>, vector<16x256xf32>
    %c0_2 = arith.constant 0 : index
    %c0_3 = arith.constant 0 : index
    %4 = vector.load %arg3[%c0_2, %c0_3] : memref<16x128xf32, #tpu.memory_space<vmem>>, vector<16x128xf32>
    %c0_4 = arith.constant 0 : index
    %c0_5 = arith.constant 0 : index
    %5 = vector.load %arg4[%c0_4, %c0_5] : memref<128x256xf32, #tpu.memory_space<vmem>>, vector<128x256xf32>
    %cst = arith.constant dense<0.000000e+00> : vector<16x256xf32>
    %6 = tpu.matmul %4, %5, %cst {dimension_numbers = #tpu.dot_dimension_numbers<[1], [0], [0], [1], [0, 0, 1, 1], [], []>} : vector<16x128xf32>, vector<128x256xf32>, vector<16x256xf32> -> vector<16x256xf32>
    %7 = arith.addf %3, %6 : vector<16x256xf32>
    %c0_6 = arith.constant 0 : index
    %c0_7 = arith.constant 0 : index
    %8 = vector.load %arg7[%c0_6, %c0_7] : memref<16x256xf32, #tpu.memory_space<vmem>>, vector<16x256xf32>
    tpu.vector_store %arg7[%c0_6, %c0_7], %7 {strides = array<i32>} : memref<16x256xf32, #tpu.memory_space<vmem>>, vector<16x256xf32>,
    %c0_i32_8 = arith.constant 0 : i32
    %9 = arith.cmpi eq, %arg2, %c0_i32_8 : i32
    %10 = arith.extui %9 : i1 to i32
    %c0_i32_9 = arith.constant 0 : i32
    %11 = arith.cmpi ne, %10, %c0_i32_9 : i32
    scf.if %11 {
      %c0_10 = arith.constant 0 : index
      %c0_11 = arith.constant 0 : index
      %12 = vector.load %arg7[%c0_10, %c0_11] : memref<16x256xf32, #tpu.memory_space<vmem>>, vector<16x256xf32>
      %c0_12 = arith.constant 0 : index
      %c0_13 = arith.constant 0 : index
      %13 = vector.load %arg5[%c0_12, %c0_13] : memref<1x256xf32, #tpu.memory_space<vmem>>, vector<1x256xf32>
      %14 = vector.broadcast %13 : vector<1x256xf32> to vector<16x256xf32>
      %15 = arith.addf %12, %14 : vector<16x256xf32>
      %cst_14 = arith.constant 0.000000e+00 : f32
      %16 = vector.broadcast %cst_14 : f32 to vector<16x256xf32>
      %17 = arith.maximumf %15, %16 : vector<16x256xf32>
      %c0_15 = arith.constant 0 : index
      %c0_16 = arith.constant 0 : index
      %18 = vector.load %arg6[%c0_15, %c0_16] : memref<16x256xf32, #tpu.memory_space<vmem>>, vector<16x256xf32>
      tpu.vector_store %arg6[%c0_15, %c0_16], %17 {strides = array<i32>} : memref<16x256xf32, #tpu.memory_space<vmem>>, vector<16x256xf32>,
    } else {
    }
    return
  }
  func.func @transform_0(%arg0: i32, %arg1: i32, %arg2: i32) -> (i32, i32) {
    %c0_i32 = arith.constant 0 : i32
    return %arg0, %arg2 : i32, i32
  }
  func.func @transform_1(%arg0: i32, %arg1: i32, %arg2: i32) -> (i32, i32) {
    %c0_i32 = arith.constant 0 : i32
    return %arg2, %arg1 : i32, i32
  }
  func.func @transform_2(%arg0: i32, %arg1: i32, %arg2: i32) -> (i32, i32) {
    %c0_i32 = arith.constant 0 : i32
    %c0_i32_0 = arith.constant 0 : i32
    return %c0_i32, %arg1 : i32, i32
  }
  func.func @transform_3(%arg0: i32, %arg1: i32, %arg2: i32) -> (i32, i32) {
    %c0_i32 = arith.constant 0 : i32
    return %arg0, %arg1 : i32, i32
  }
}

module attributes {stable_mosaic.version = 11 : i64} {
  func.func @_linear_kernel(%arg0: i32, %arg1: i32, %arg2: i32, %arg3: memref<16x128xf32, #tpu.memory_space<vmem>>, %arg4: memref<128x128xf32, #tpu.memory_space<vmem>>, %arg5: memref<1x128xf32, #tpu.memory_space<vmem>>, %arg6: memref<16x128xf32, #tpu.memory_space<vmem>>, %arg7: memref<16x128xf32, #tpu.memory_space<vmem>>, %arg8: memref<16x128xf32, #tpu.memory_space<vmem>>) attributes {dimension_semantics = [#tpu.dimension_semantics<parallel>, #tpu.dimension_semantics<parallel>, #tpu.dimension_semantics<arbitrary>], iteration_bounds = array<i64: 1, 1, 1>, scalar_prefetch = 0 : i64, scratch_operands = 1 : i64, tpu.core_type = #tpu.core_type<tc>, window_params = [{transform_indices = @transform_0, window_bounds = array<i64: 16, 128>}, {transform_indices = @transform_1, window_bounds = array<i64: 128, 128>}, {transform_indices = @transform_2, window_bounds = array<i64: 1, 128>}, {transform_indices = @transform_3, window_bounds = array<i64: 16, 128>}, {transform_indices = @transform_4, window_bounds = array<i64: 16, 128>}]} {
    %c0_i32 = arith.constant 0 : i32
    %0 = arith.cmpi eq, %arg2, %c0_i32 : i32
    %1 = arith.extui %0 : i1 to i32
    %c0_i32_0 = arith.constant 0 : i32
    %2 = arith.cmpi ne, %1, %c0_i32_0 : i32
    scf.if %2 {
      %cst_10 = arith.constant 0.000000e+00 : f32
      %12 = vector.broadcast %cst_10 : f32 to vector<16x128xf32>
      %c0_11 = arith.constant 0 : index
      %c0_12 = arith.constant 0 : index
      %13 = vector.load %arg8[%c0_11, %c0_12] : memref<16x128xf32, #tpu.memory_space<vmem>>, vector<16x128xf32>
      tpu.vector_store %arg8[%c0_11, %c0_12], %12 {strides = array<i32>} : memref<16x128xf32, #tpu.memory_space<vmem>>, vector<16x128xf32>,
    } else {
    }
    %c0 = arith.constant 0 : index
    %c0_1 = arith.constant 0 : index
    %3 = vector.load %arg8[%c0, %c0_1] : memref<16x128xf32, #tpu.memory_space<vmem>>, vector<16x128xf32>
    %c0_2 = arith.constant 0 : index
    %c0_3 = arith.constant 0 : index
    %4 = vector.load %arg3[%c0_2, %c0_3] : memref<16x128xf32, #tpu.memory_space<vmem>>, vector<16x128xf32>
    %c0_4 = arith.constant 0 : index
    %c0_5 = arith.constant 0 : index
    %5 = vector.load %arg4[%c0_4, %c0_5] : memref<128x128xf32, #tpu.memory_space<vmem>>, vector<128x128xf32>
    %cst = arith.constant dense<0.000000e+00> : vector<16x128xf32>
    %6 = tpu.matmul %4, %5, %cst {dimension_numbers = #tpu.dot_dimension_numbers<[1], [0], [0], [1], [0, 0, 1, 1], [], []>} : vector<16x128xf32>, vector<128x128xf32>, vector<16x128xf32> -> vector<16x128xf32>
    %7 = arith.addf %3, %6 : vector<16x128xf32>
    %c0_6 = arith.constant 0 : index
    %c0_7 = arith.constant 0 : index
    %8 = vector.load %arg8[%c0_6, %c0_7] : memref<16x128xf32, #tpu.memory_space<vmem>>, vector<16x128xf32>
    tpu.vector_store %arg8[%c0_6, %c0_7], %7 {strides = array<i32>} : memref<16x128xf32, #tpu.memory_space<vmem>>, vector<16x128xf32>,
    %c0_i32_8 = arith.constant 0 : i32
    %9 = arith.cmpi eq, %arg2, %c0_i32_8 : i32
    %10 = arith.extui %9 : i1 to i32
    %c0_i32_9 = arith.constant 0 : i32
    %11 = arith.cmpi ne, %10, %c0_i32_9 : i32
    scf.if %11 {
      %c0_10 = arith.constant 0 : index
      %c0_11 = arith.constant 0 : index
      %12 = vector.load %arg8[%c0_10, %c0_11] : memref<16x128xf32, #tpu.memory_space<vmem>>, vector<16x128xf32>
      %c0_12 = arith.constant 0 : index
      %c0_13 = arith.constant 0 : index
      %13 = vector.load %arg5[%c0_12, %c0_13] : memref<1x128xf32, #tpu.memory_space<vmem>>, vector<1x128xf32>
      %14 = vector.broadcast %13 : vector<1x128xf32> to vector<16x128xf32>
      %15 = arith.addf %12, %14 : vector<16x128xf32>
      %c0_14 = arith.constant 0 : index
      %c0_15 = arith.constant 0 : index
      %16 = vector.load %arg6[%c0_14, %c0_15] : memref<16x128xf32, #tpu.memory_space<vmem>>, vector<16x128xf32>
      %17 = arith.addf %15, %16 : vector<16x128xf32>
      %c0_16 = arith.constant 0 : index
      %c0_17 = arith.constant 0 : index
      %18 = vector.load %arg7[%c0_16, %c0_17] : memref<16x128xf32, #tpu.memory_space<vmem>>, vector<16x128xf32>
      tpu.vector_store %arg7[%c0_16, %c0_17], %17 {strides = array<i32>} : memref<16x128xf32, #tpu.memory_space<vmem>>, vector<16x128xf32>,
    } else {
    }
    return
  }
  func.func @transform_0(%arg0: i32, %arg1: i32, %arg2: i32) -> (i32, i32) {
    %c0_i32 = arith.constant 0 : i32
    return %arg0, %arg2 : i32, i32
  }
  func.func @transform_1(%arg0: i32, %arg1: i32, %arg2: i32) -> (i32, i32) {
    %c0_i32 = arith.constant 0 : i32
    return %arg2, %arg1 : i32, i32
  }
  func.func @transform_2(%arg0: i32, %arg1: i32, %arg2: i32) -> (i32, i32) {
    %c0_i32 = arith.constant 0 : i32
    %c0_i32_0 = arith.constant 0 : i32
    return %c0_i32, %arg1 : i32, i32
  }
  func.func @transform_3(%arg0: i32, %arg1: i32, %arg2: i32) -> (i32, i32) {
    %c0_i32 = arith.constant 0 : i32
    return %arg0, %arg1 : i32, i32
  }
  func.func @transform_4(%arg0: i32, %arg1: i32, %arg2: i32) -> (i32, i32) {
    %c0_i32 = arith.constant 0 : i32
    return %arg0, %arg1 : i32, i32
  }
}

</mosaic_0001>

<llo_original>
// kernel: decoder_block.15
$region0: #{decoder_block.15}
  #allocation0 [shape = 'u32[]', space=smem, size = 0x4, offset = 0x4, fixed_abs, tag = 'smem constant byte address 0x4 - core index']
  #allocation1 [shape = 'u32[72,128]{1,0:T(1,128)}', space=vmem, size = 0x9000, scoped, tag = 'internal scratch']
  %s0 = inlined_call_operand.vmem [shape: f32[16,128], index: 0, kind: input, shape index: {}]
  %s1 = inlined_call_operand.vmem [shape: f32[1,128], index: 1, kind: input, shape index: {}]
  %s2 = inlined_call_operand.vmem [shape: f32[1,128], index: 2, kind: input, shape index: {}]
  %s3 = inlined_call_operand.vmem [shape: f32[16,128], index: 3, kind: output, shape index: {}]
  %s4 = sld [smem:[#allocation0]]
  $region22: #{decoder_block.15} parent=0
    _
  %s6 = ssub.s32 1, %s4
  %s7 = scalar_select 0, %s6, %s4
  // Predicated region
  $region2: #{decoder_block.15} parent=0 // pred_check
    _
  $region3: #{decoder_block.15} parent=0 // pred_check_branch
    %9 = sbr.rel (0) target = $region5
  $region4: #{decoder_block.15} parent=0 // pred_region
    _
  $region5: #{decoder_block.15} parent=0 // pred_fallthru
    _
  // Predicated region
  $region6: #{decoder_block.15} parent=0 // pred_check
    _
  $region7: #{decoder_block.15} parent=0 // pred_check_branch
    %11 = sbr.rel (0) target = $region9
  $region8: #{decoder_block.15} parent=0 // pred_region
    _
  $region9: #{decoder_block.15} parent=0 // pred_fallthru
    _
  // Predicated region
  $region10: #{decoder_block.15} parent=0 // pred_check
    _
  $region11: #{decoder_block.15} parent=0 // pred_check_branch
    %13 = sbr.rel (0) target = $region13
  $region12: #{decoder_block.15} parent=0 // pred_region
    _
  $region13: #{decoder_block.15} parent=0 // pred_fallthru
    _
  %v14 = vld [vmem:[%s0] sm:$0xff]
  %v15 = vld [vmem:[%s0 + $0x8] sm:$0xff]
  %16 = vadd.xlane.f32.xlu0 %v14
  %v17 = vpop.xlane.xlu0 %16
  %18 = vadd.xlane.f32.xlu0 %v15
  %v19 = vpop.xlane.xlu0 %18
  %v20 = vrcp.pop 128.0
  %v21 = vmul.f32 128.0, %v20
  %v22 = vsub.f32 1.0, %v21
  %v23 = vmul.f32 %v20, %v22
  %v24 = vadd.f32 %v20, %v23
  %vm25 = vweird.f32 %v20
  %v26 = vsel %vm25, %v20, %v24
  %v27 = vmul.f32 %v17, %v26
  %v28 = vmul.f32 %v19, %v26
  %v29 = vsub.f32 %v14, %v27
  %v30 = vsub.f32 %v15, %v28
  %v31 = vmul.f32 %v29, %v29
  %v32 = vmul.f32 %v30, %v30
  %33 = vadd.xlane.f32.xlu0 %v31
  %v34 = vpop.xlane.xlu0 %33
  %35 = vadd.xlane.f32.xlu0 %v32
  %v36 = vpop.xlane.xlu0 %35
  %v37 = vmul.f32 %v34, %v26
  %v38 = vmul.f32 %v36, %v26
  %v39 = vadd.f32 %v37, 1e-05
  %v40 = vadd.f32 %v38, 1e-05
  %v41 = vrsqrt.pop %v39
  %v42 = vmul.f32 %v41, %v39
  %v43 = vmul.f32 %v42, %v41
  %v44 = vmul.f32 0.5, %v43
  %v45 = vsub.f32 1.5, %v44
  %v46 = vmul.f32 %v41, %v45
  %vm47 = vweird.f32 %v39
  %vm48 = vweird.f32 %v41
  %vm49 = vmor %vm47, %vm48
  %v50 = vsel %vm49, %v41, %v46
  %v51 = vrsqrt.pop %v40
  %v52 = vmul.f32 %v51, %v40
  %v53 = vmul.f32 %v52, %v51
  %v54 = vmul.f32 0.5, %v53
  %v55 = vsub.f32 1.5, %v54
  %v56 = vmul.f32 %v51, %v55
  %vm57 = vweird.f32 %v40
  %vm58 = vweird.f32 %v51
  %vm59 = vmor %vm57, %vm58
  %v60 = vsel %vm59, %v51, %v56
  %v61 = vmul.f32 %v29, %v50
  %v62 = vmul.f32 %v30, %v60
  %v63 = vld [vmem:[%s1] sm:$0x1]
  %v65 = vperm.slane %v63, 0
  %v67 = vmul.f32 %v61, %v65
  %v68 = vmul.f32 %v62, %v65
  %v69 = vld [vmem:[%s2] sm:$0x1]
  %v71 = vperm.slane %v69, 0
  %v73 = vadd.f32 %v67, %v71
  %v74 = vadd.f32 %v68, %v71
  %75 = vst [vmem:[%s3] sm:$0xff] %v73
  %76 = vst [vmem:[%s3 + $0x8] sm:$0xff] %v74
  // Predicated region
  $region14: #{decoder_block.15} parent=0 // pred_check
    _
  $region15: #{decoder_block.15} parent=0 // pred_check_branch
    %78 = sbr.rel (0) target = $region17
  $region16: #{decoder_block.15} parent=0 // pred_region
    _
  $region17: #{decoder_block.15} parent=0 // pred_fallthru
    _
  // Predicated region
  $region18: #{decoder_block.15} parent=0 // pred_check
    _
  $region19: #{decoder_block.15} parent=0 // pred_check_branch
    %80 = sbr.rel (0) target = $region21
  $region20: #{decoder_block.15} parent=0 // pred_region
    _
  $region21: #{decoder_block.15} parent=0 // pred_fallthru
    _

// kernel: decoder_block.18
$region0: #{decoder_block.18}
  #allocation0 [shape = 'u32[]', space=smem, size = 0x4, offset = 0x4, fixed_abs, tag = 'smem constant byte address 0x4 - core index']
  #allocation1 [shape = 'u32[72,128]{1,0:T(1,128)}', space=vmem, size = 0x9000, scoped, tag = 'internal scratch']
  #allocation2 [shape = 'f32[16,128]{1,0:T(8,128)}', space=vmem, size = 0x2000, scoped, tag = 'scratch operand']
  %s0 = inlined_call_operand.vmem [shape: f32[16,128], index: 0, kind: input, shape index: {}]
  %s1 = inlined_call_operand.hbm [shape: f32[128,128], index: 1, kind: input, shape index: {}]
  %s2 = inlined_call_operand.vmem [shape: f32[1,128], index: 2, kind: input, shape index: {}]
  %s3 = inlined_call_operand.vmem [shape: f32[16,128], index: 3, kind: output, shape index: {}]
  %s4 = sld [smem:[#allocation0]]
  $region34: #{decoder_block.18} parent=0
    _
  %s6 = ssub.s32 1, %s4
  %s7 = scalar_select 0, %s6, %s4
  $region1: #{decoder_block.18} parent=0
    #allocation3 [shape = 'u8[65536]{0}', space=vmem, size = 0x10000, scoped, tag = 'input window, operand 1, single buffered']
    #allocation4 [shape = 's32[1]{0}', space=sflag, size = 0x4, scoped, tag = 'scoped memory for decoder_block.18']
    %8 = vsyncpa [#allocation4], 0
    // Predicated region
    $region2: #{decoder_block.18} parent=1 // pred_check
      _
    $region3: #{decoder_block.18} parent=1 // pred_check_branch
      %10 = sbr.rel (0) target = $region5
    $region4: #{decoder_block.18} parent=1 // pred_region
      _
    $region5: #{decoder_block.18} parent=1 // pred_fallthru
      _
    // Predicated region
    $region6: #{decoder_block.18} parent=1 // pred_check
      _
    $region7: #{decoder_block.18} parent=1 // pred_check_branch
      %12 = sbr.rel (0) target = $region9
    $region8: #{decoder_block.18} parent=1 // pred_region
      %14 = vsyncadd [#allocation4], 0
      %s15 = sshll.u32 %s1, 4
      %s16 = int_to_ptr.hbm [resolvable:$true] %s15
      %s17 = sshll.u32 [#allocation3], 4
      %s18 = int_to_ptr.vmem [resolvable:$true] %s17
      %23 = dma.hbm_to_vmem [thread:$0]  %s16, 2048, %s18, [#allocation4], 128, 128, 8
    $region9: #{decoder_block.18} parent=1 // pred_fallthru
      _
    // Predicated region
    $region10: #{decoder_block.18} parent=1 // pred_check
      _
    $region11: #{decoder_block.18} parent=1 // pred_check_branch
      %25 = sbr.rel (0) target = $region13
    $region12: #{decoder_block.18} parent=1 // pred_region
      _
    $region13: #{decoder_block.18} parent=1 // pred_fallthru
      _
    // Predicated region
    $region14: #{decoder_block.18} parent=1 // pred_check
      _
    $region15: #{decoder_block.18} parent=1 // pred_check_branch
      %27 = sbr.rel (0) target = $region17
    $region16: #{decoder_block.18} parent=1 // pred_region
      %29 = dma.done [#allocation4], 2048
    $region17: #{decoder_block.18} parent=1 // pred_fallthru
      _
    %p30 = scmp.eq.s32.totalorder 0, 0
    // Predicated region
    $region18: #{decoder_block.18} parent=1 // pred_check
      %p31 = pneg %p30
    $region19: #{decoder_block.18} parent=1 // pred_check_branch
      %33 = sbr.rel (%p31) target = $region21
    $region20: #{decoder_block.18} parent=1 // pred_region
      %34 = vst [vmem:[#allocation2] sm:$0xff] 0.0
      %35 = vst [vmem:[#allocation2 + $0x8] sm:$0xff] 0.0
    $region21: #{decoder_block.18} parent=1 // pred_fallthru
      _
    %v36 = vld [vmem:[#allocation2] sm:$0xff]
    %v37 = vld [vmem:[#allocation2 + $0x8] sm:$0xff]
    %v38 = vld [vmem:[%s0] sm:$0xff]
    %v39 = vld [vmem:[%s0 + $0x8] sm:$0xff]
    %v40 = vld [vmem:[#allocation3] sm:$0xff]
    %v41 = vld [vmem:[#allocation3 + $0x8] sm:$0xff]
    %v42 = vld [vmem:[#allocation3 + $0x10] sm:$0xff]
    %v43 = vld [vmem:[#allocation3 + $0x18] sm:$0xff]
    %v44 = vld [vmem:[#allocation3 + $0x20] sm:$0xff]
    %v45 = vld [vmem:[#allocation3 + $0x28] sm:$0xff]
    %v46 = vld [vmem:[#allocation3 + $0x30] sm:$0xff]
    %v47 = vld [vmem:[#allocation3 + $0x38] sm:$0xff]
    %v48 = vld [vmem:[#allocation3 + $0x40] sm:$0xff]
    %v49 = vld [vmem:[#allocation3 + $0x48] sm:$0xff]
    %v50 = vld [vmem:[#allocation3 + $0x50] sm:$0xff]
    %v51 = vld [vmem:[#allocation3 + $0x58] sm:$0xff]
    %v52 = vld [vmem:[#allocation3 + $0x60] sm:$0xff]
    %v53 = vld [vmem:[#allocation3 + $0x68] sm:$0xff]
    %v54 = vld [vmem:[#allocation3 + $0x70] sm:$0xff]
    %v55 = vld [vmem:[#allocation3 + $0x78] sm:$0xff]
    %56 = vmatpush.msra.mxu0 %v55
    %57 = vmatpush.msra.mxu0 %v54
    %58 = vmatpush.msra.mxu0 %v53
    %59 = vmatpush.msra.mxu0 %v52
    %60 = vmatpush.msra.mxu0 %v51
    %61 = vmatpush.msra.mxu0 %v50
    %62 = vmatpush.msra.mxu0 %v49
    %63 = vmatpush.msra.mxu0 %v48
    %64 = vmatpush.msra.mxu0 %v47
    %65 = vmatpush.msra.mxu0 %v46
    %66 = vmatpush.msra.mxu0 %v45
    %67 = vmatpush.msra.mxu0 %v44
    %68 = vmatpush.msra.mxu0 %v43
    %69 = vmatpush.msra.mxu0 %v42
    %70 = vmatpush.msra.mxu0 %v41
    %71 = vmatpush.msra.mxu0 %v40
    %72 = vmatmul.f32.gmra.mxu0 %v38
    %v73 = vpop.f32.mrf.mxu0
    %v74 = vadd.f32 0.0, %v73
    %75 = vmatmul.f32.gmra.mxu0 %v39
    %v76 = vpop.f32.mrf.mxu0
    %v77 = vadd.f32 0.0, %v76
    %78 = vdwg.mxu0
    %v79 = vadd.f32 %v36, %v74
    %v80 = vadd.f32 %v37, %v77
    %81 = vst [vmem:[#allocation2] sm:$0xff] %v79
    %82 = vst [vmem:[#allocation2 + $0x8] sm:$0xff] %v80
    // Predicated region
    $region22: #{decoder_block.18} parent=1 // pred_check
      %p83 = pneg %p30
    $region23: #{decoder_block.18} parent=1 // pred_check_branch
      %85 = sbr.rel (%p83) target = $region25
    $region24: #{decoder_block.18} parent=1 // pred_region
      %v86 = vld [vmem:[#allocation2] sm:$0xff]
      %v87 = vld [vmem:[#allocation2 + $0x8] sm:$0xff]
      %v88 = vld [vmem:[%s2] sm:$0x1]
      %v90 = vperm.slane %v88, 0
      %v92 = vadd.f32 %v86, %v90
      %v93 = vadd.f32 %v87, %v90
      %94 = vst [vmem:[%s3] sm:$0xff] %v92
      %95 = vst [vmem:[%s3 + $0x8] sm:$0xff] %v93
    $region25: #{decoder_block.18} parent=1 // pred_fallthru
      _
    // Predicated region
    $region26: #{decoder_block.18} parent=1 // pred_check
      _
    $region27: #{decoder_block.18} parent=1 // pred_check_branch
      %97 = sbr.rel (0) target = $region29
    $region28: #{decoder_block.18} parent=1 // pred_region
      _
    $region29: #{decoder_block.18} parent=1 // pred_fallthru
      _
    // Predicated region
    $region30: #{decoder_block.18} parent=1 // pred_check
      _
    $region31: #{decoder_block.18} parent=1 // pred_check_branch
      %99 = sbr.rel (0) target = $region33
    $region32: #{decoder_block.18} parent=1 // pred_region
      _
    $region33: #{decoder_block.18} parent=1 // pred_fallthru
      _
    %100 = vsyncpa [#allocation4], 1

// kernel: decoder_block.17
$region0: #{decoder_block.17}
  #allocation0 [shape = 'u32[]', space=smem, size = 0x4, offset = 0x4, fixed_abs, tag = 'smem constant byte address 0x4 - core index']
  #allocation1 [shape = 'u32[72,128]{1,0:T(1,128)}', space=vmem, size = 0x9000, scoped, tag = 'internal scratch']
  #allocation2 [shape = 'f32[16,128]{1,0:T(8,128)}', space=vmem, size = 0x2000, scoped, tag = 'scratch operand']
  %s0 = inlined_call_operand.vmem [shape: f32[16,128], index: 0, kind: input, shape index: {}]
  %s1 = inlined_call_operand.vmem [shape: f32[128,128], index: 1, kind: input, shape index: {}]
  %s2 = inlined_call_operand.vmem [shape: f32[1,128], index: 2, kind: input, shape index: {}]
  %s3 = inlined_call_operand.vmem [shape: f32[16,128], index: 3, kind: output, shape index: {}]
  %s4 = sld [smem:[#allocation0]]
  $region30: #{decoder_block.17} parent=0
    _
  %s6 = ssub.s32 1, %s4
  %s7 = scalar_select 0, %s6, %s4
  // Predicated region
  $region2: #{decoder_block.17} parent=0 // pred_check
    _
  $region3: #{decoder_block.17} parent=0 // pred_check_branch
    %9 = sbr.rel (0) target = $region5
  $region4: #{decoder_block.17} parent=0 // pred_region
    _
  $region5: #{decoder_block.17} parent=0 // pred_fallthru
    _
  // Predicated region
  $region6: #{decoder_block.17} parent=0 // pred_check
    _
  $region7: #{decoder_block.17} parent=0 // pred_check_branch
    %11 = sbr.rel (0) target = $region9
  $region8: #{decoder_block.17} parent=0 // pred_region
    _
  $region9: #{decoder_block.17} parent=0 // pred_fallthru
    _
  // Predicated region
  $region10: #{decoder_block.17} parent=0 // pred_check
    _
  $region11: #{decoder_block.17} parent=0 // pred_check_branch
    %13 = sbr.rel (0) target = $region13
  $region12: #{decoder_block.17} parent=0 // pred_region
    _
  $region13: #{decoder_block.17} parent=0 // pred_fallthru
    _
  %p14 = scmp.eq.s32.totalorder 0, 0
  // Predicated region
  $region14: #{decoder_block.17} parent=0 // pred_check
    %p15 = pneg %p14
  $region15: #{decoder_block.17} parent=0 // pred_check_branch
    %17 = sbr.rel (%p15) target = $region17
  $region16: #{decoder_block.17} parent=0 // pred_region
    %18 = vst [vmem:[#allocation2] sm:$0xff] 0.0
    %19 = vst [vmem:[#allocation2 + $0x8] sm:$0xff] 0.0
  $region17: #{decoder_block.17} parent=0 // pred_fallthru
    _
  %v20 = vld [vmem:[#allocation2] sm:$0xff]
  %v21 = vld [vmem:[#allocation2 + $0x8] sm:$0xff]
  %v22 = vld [vmem:[%s0] sm:$0xff]
  %v23 = vld [vmem:[%s0 + $0x8] sm:$0xff]
  %v24 = vld [vmem:[%s1] sm:$0xff]
  %v25 = vld [vmem:[%s1 + $0x8] sm:$0xff]
  %v26 = vld [vmem:[%s1 + $0x10] sm:$0xff]
  %v27 = vld [vmem:[%s1 + $0x18] sm:$0xff]
  %v28 = vld [vmem:[%s1 + $0x20] sm:$0xff]
  %v29 = vld [vmem:[%s1 + $0x28] sm:$0xff]
  %v30 = vld [vmem:[%s1 + $0x30] sm:$0xff]
  %v31 = vld [vmem:[%s1 + $0x38] sm:$0xff]
  %v32 = vld [vmem:[%s1 + $0x40] sm:$0xff]
  %v33 = vld [vmem:[%s1 + $0x48] sm:$0xff]
  %v34 = vld [vmem:[%s1 + $0x50] sm:$0xff]
  %v35 = vld [vmem:[%s1 + $0x58] sm:$0xff]
  %v36 = vld [vmem:[%s1 + $0x60] sm:$0xff]
  %v37 = vld [vmem:[%s1 + $0x68] sm:$0xff]
  %v38 = vld [vmem:[%s1 + $0x70] sm:$0xff]
  %v39 = vld [vmem:[%s1 + $0x78] sm:$0xff]
  %40 = vmatpush.msra.mxu0 %v39
  %41 = vmatpush.msra.mxu0 %v38
  %42 = vmatpush.msra.mxu0 %v37
  %43 = vmatpush.msra.mxu0 %v36
  %44 = vmatpush.msra.mxu0 %v35
  %45 = vmatpush.msra.mxu0 %v34
  %46 = vmatpush.msra.mxu0 %v33
  %47 = vmatpush.msra.mxu0 %v32
  %48 = vmatpush.msra.mxu0 %v31
  %49 = vmatpush.msra.mxu0 %v30
  %50 = vmatpush.msra.mxu0 %v29
  %51 = vmatpush.msra.mxu0 %v28
  %52 = vmatpush.msra.mxu0 %v27
  %53 = vmatpush.msra.mxu0 %v26
  %54 = vmatpush.msra.mxu0 %v25
  %55 = vmatpush.msra.mxu0 %v24
  %56 = vmatmul.f32.gmra.mxu0 %v22
  %v57 = vpop.f32.mrf.mxu0
  %v58 = vadd.f32 0.0, %v57
  %59 = vmatmul.f32.gmra.mxu0 %v23
  %v60 = vpop.f32.mrf.mxu0
  %v61 = vadd.f32 0.0, %v60
  %62 = vdwg.mxu0
  %v63 = vadd.f32 %v20, %v58
  %v64 = vadd.f32 %v21, %v61
  %65 = vst [vmem:[#allocation2] sm:$0xff] %v63
  %66 = vst [vmem:[#allocation2 + $0x8] sm:$0xff] %v64
  // Predicated region
  $region18: #{decoder_block.17} parent=0 // pred_check
    %p67 = pneg %p14
  $region19: #{decoder_block.17} parent=0 // pred_check_branch
    %69 = sbr.rel (%p67) target = $region21
  $region20: #{decoder_block.17} parent=0 // pred_region
    %v70 = vld [vmem:[#allocation2] sm:$0xff]
    %v71 = vld [vmem:[#allocation2 + $0x8] sm:$0xff]
    %v72 = vld [vmem:[%s2] sm:$0x1]
    %v74 = vperm.slane %v72, 0
    %v76 = vadd.f32 %v70, %v74
    %v77 = vadd.f32 %v71, %v74
    %78 = vst [vmem:[%s3] sm:$0xff] %v76
    %79 = vst [vmem:[%s3 + $0x8] sm:$0xff] %v77
  $region21: #{decoder_block.17} parent=0 // pred_fallthru
    _
  // Predicated region
  $region22: #{decoder_block.17} parent=0 // pred_check
    _
  $region23: #{decoder_block.17} parent=0 // pred_check_branch
    %81 = sbr.rel (0) target = $region25
  $region24: #{decoder_block.17} parent=0 // pred_region
    _
  $region25: #{decoder_block.17} parent=0 // pred_fallthru
    _
  // Predicated region
  $region26: #{decoder_block.17} parent=0 // pred_check
    _
  $region27: #{decoder_block.17} parent=0 // pred_check_branch
    %83 = sbr.rel (0) target = $region29
  $region28: #{decoder_block.17} parent=0 // pred_region
    _
  $region29: #{decoder_block.17} parent=0 // pred_fallthru
    _

// kernel: decoder_block.19
$region0: #{decoder_block.19}
  #allocation0 [shape = 'u32[]', space=smem, size = 0x4, offset = 0x4, fixed_abs, tag = 'smem constant byte address 0x4 - core index']
  #allocation1 [shape = 'u32[72,128]{1,0:T(1,128)}', space=vmem, size = 0x9000, scoped, tag = 'internal scratch']
  %s0 = inlined_call_operand.vmem [shape: f32[2,4,8,32], index: 0, kind: input, shape index: {}]
  %s1 = inlined_call_operand.vmem [shape: f32[2,4,8,32], index: 1, kind: input, shape index: {}]
  %s2 = inlined_call_operand.vmem [shape: f32[2,4,8,32], index: 2, kind: input, shape index: {}]
  %s3 = inlined_call_operand.vmem [shape: f32[2,8,8], index: 3, kind: input, shape index: {}]
  %s4 = inlined_call_operand.vmem [shape: f32[2,4,8,32], index: 4, kind: output, shape index: {}]
  %s5 = sld [smem:[#allocation0]]
  $region49: #{decoder_block.19} parent=0
    _
  %s7 = ssub.s32 1, %s5
  %s8 = scalar_select 0, %s7, %s5
  loop: start=0, step=1, limit=10
  $region2: #{decoder_block.19} parent=0 // loop_pre_header
    _
  $region3: #{decoder_block.19} parent=0 // loop_header
    %s10 = sphi 0, %s14
    %p11 = scmp.ge.s32.totalorder %s10, 10
    %s17 = sphi 0, %s29
    %s18 = sphi 0, %s25
    %s19 = sphi 0, %s17
    %s20 = sphi 0, %s18
    %s21 = sphi 0, %s19
    %s22 = sphi 0, %s20
    %s34 = sphi 0, %s36
    %s37 = sphi 0, %s34
    %s38 = sphi 0, %s37
    %s54 = sphi 0, %s38
    %s62 = sphi 0, %s64
    %s65 = sphi 0, %s62
    %s66 = sphi 0, %s65
    %s82 = sphi 0, %s66
    %s90 = sphi 0, %s92
    %s93 = sphi 0, %s90
    %s94 = sphi 0, %s93
    %s110 = sphi 0, %s94
    %s116 = sphi 0, %s118
    %s119 = sphi 0, %s116
    %s120 = sphi 0, %s119
    %s136 = sphi 0, %s120
    %s144 = sphi 0, %s146
    %s147 = sphi 0, %s144
    %s148 = sphi 0, %s147
    %s164 = sphi 0, %s148
  $region4: #{decoder_block.19} parent=0 // loop_header_branch
    %13 = sbr.rel (%p11) target = $region8
  $region5: #{decoder_block.19} parent=0 // loop_body
    %s15 = ssub.s32 %s10, 1
    %s16 = ssub.s32 %s10, 2
    %s23 = sadd.s32 1, %s18
    %p24 = scmp.ge.s32.totalorder %s23, 4
    %s25 = scalar_select %p24, 0, %s23
    %s26 = sadd.s32 1, %s17
    %s27 = scalar_select %p24, %s26, %s17
    %p28 = scmp.ge.s32.totalorder %s27, 2
    %s29 = scalar_select %p28, 0, %s27
    %s30 = ssub.s32 %s17, %s29
    %s31 = ssub.s32 %s18, %s25
    %s32 = sor.u32 %s30, %s31
    %p33 = scmp.eq.s32.totalorder %s32, 0
    %s35 = sadd.s32 %s34, 1
    %s36 = scalar_select %p33, %s34, %s35
    %p39 = pneg %p33
    %p40 = scmp.eq.s32.totalorder %s10, 7
    %p41 = por %p39, %p40
    %p42 = scmp.ne.s32.totalorder %s34, %s37
    %p43 = scmp.eq.s32.totalorder %s10, 0
    %p44 = por %p42, %p43
    %p45 = scmp.ne.s32.totalorder %s34, %s37
    %p46 = scmp.eq.s32.totalorder %s15, 7
    %p47 = por %p45, %p46
    %p48 = scmp.ne.s32.totalorder %s37, %s38
    %p49 = scmp.eq.s32.totalorder %s15, 0
    %p50 = por %p48, %p49
    %p51 = scmp.ne.s32.totalorder %s37, %s38
    %p52 = scmp.eq.s32.totalorder %s16, 7
    %p53 = por %p51, %p52
    %p55 = scmp.ne.s32.totalorder %s38, %s54
    %p56 = scmp.eq.s32.totalorder %s16, 0
    %p57 = por %p55, %p56
    %s58 = ssub.s32 %s17, %s29
    %s59 = ssub.s32 %s18, %s25
    %s60 = sor.u32 %s58, %s59
    %p61 = scmp.eq.s32.totalorder %s60, 0
    %s63 = sadd.s32 %s62, 1
    %s64 = scalar_select %p61, %s62, %s63
    %p67 = pneg %p61
    %p68 = scmp.eq.s32.totalorder %s10, 7
    %p69 = por %p67, %p68
    %p70 = scmp.ne.s32.totalorder %s62, %s65
    %p71 = scmp.eq.s32.totalorder %s10, 0
    %p72 = por %p70, %p71
    %p73 = scmp.ne.s32.totalorder %s62, %s65
    %p74 = scmp.eq.s32.totalorder %s15, 7
    %p75 = por %p73, %p74
    %p76 = scmp.ne.s32.totalorder %s65, %s66
    %p77 = scmp.eq.s32.totalorder %s15, 0
    %p78 = por %p76, %p77
    %p79 = scmp.ne.s32.totalorder %s65, %s66
    %p80 = scmp.eq.s32.totalorder %s16, 7
    %p81 = por %p79, %p80
    %p83 = scmp.ne.s32.totalorder %s66, %s82
    %p84 = scmp.eq.s32.totalorder %s16, 0
    %p85 = por %p83, %p84
    %s86 = ssub.s32 %s17, %s29
    %s87 = ssub.s32 %s18, %s25
    %s88 = sor.u32 %s86, %s87
    %p89 = scmp.eq.s32.totalorder %s88, 0
    %s91 = sadd.s32 %s90, 1
    %s92 = scalar_select %p89, %s90, %s91
    %p95 = pneg %p89
    %p96 = scmp.eq.s32.totalorder %s10, 7
    %p97 = por %p95, %p96
    %p98 = scmp.ne.s32.totalorder %s90, %s93
    %p99 = scmp.eq.s32.totalorder %s10, 0
    %p100 = por %p98, %p99
    %p101 = scmp.ne.s32.totalorder %s90, %s93
    %p102 = scmp.eq.s32.totalorder %s15, 7
    %p103 = por %p101, %p102
    %p104 = scmp.ne.s32.totalorder %s93, %s94
    %p105 = scmp.eq.s32.totalorder %s15, 0
    %p106 = por %p104, %p105
    %p107 = scmp.ne.s32.totalorder %s93, %s94
    %p108 = scmp.eq.s32.totalorder %s16, 7
    %p109 = por %p107, %p108
    %p111 = scmp.ne.s32.totalorder %s94, %s110
    %p112 = scmp.eq.s32.totalorder %s16, 0
    %p113 = por %p111, %p112
    %s114 = ssub.s32 %s17, %s29
    %p115 = scmp.eq.s32.totalorder %s114, 0
    %s117 = sadd.s32 %s116, 1
    %s118 = scalar_select %p115, %s116, %s117
    %p121 = pneg %p115
    %p122 = scmp.eq.s32.totalorder %s10, 7
    %p123 = por %p121, %p122
    %p124 = scmp.ne.s32.totalorder %s116, %s119
    %p125 = scmp.eq.s32.totalorder %s10, 0
    %p126 = por %p124, %p125
    %p127 = scmp.ne.s32.totalorder %s116, %s119
    %p128 = scmp.eq.s32.totalorder %s15, 7
    %p129 = por %p127, %p128
    %p130 = scmp.ne.s32.totalorder %s119, %s120
    %p131 = scmp.eq.s32.totalorder %s15, 0
    %p132 = por %p130, %p131
    %p133 = scmp.ne.s32.totalorder %s119, %s120
    %p134 = scmp.eq.s32.totalorder %s16, 7
    %p135 = por %p133, %p134
    %p137 = scmp.ne.s32.totalorder %s120, %s136
    %p138 = scmp.eq.s32.totalorder %s16, 0
    %p139 = por %p137, %p138
    %s140 = ssub.s32 %s17, %s29
    %s141 = ssub.s32 %s18, %s25
    %s142 = sor.u32 %s140, %s141
    %p143 = scmp.eq.s32.totalorder %s142, 0
    %s145 = sadd.s32 %s144, 1
    %s146 = scalar_select %p143, %s144, %s145
    %p149 = pneg %p143
    %p150 = scmp.eq.s32.totalorder %s10, 7
    %p151 = por %p149, %p150
    %p152 = scmp.ne.s32.totalorder %s144, %s147
    %p153 = scmp.eq.s32.totalorder %s10, 0
    %p154 = por %p152, %p153
    %p155 = scmp.ne.s32.totalorder %s144, %s147
    %p156 = scmp.eq.s32.totalorder %s15, 7
    %p157 = por %p155, %p156
    %p158 = scmp.ne.s32.totalorder %s147, %s148
    %p159 = scmp.eq.s32.totalorder %s15, 0
    %p160 = por %p158, %p159
    %p161 = scmp.ne.s32.totalorder %s147, %s148
    %p162 = scmp.eq.s32.totalorder %s16, 7
    %p163 = por %p161, %p162
    %p165 = scmp.ne.s32.totalorder %s148, %s164
    %p166 = scmp.eq.s32.totalorder %s16, 0
    %p167 = por %p165, %p166
    %p168 = scmp.le.s32.totalorder 1, %s10
    %p169 = scmp.lt.s32.totalorder %s10, 9
    %p170 = pnand %p168, %p169
    %p171 = pneg %p170
    // Predicated region
    $region9: #{decoder_block.19} parent=5 // pred_check
      _
    $region10: #{decoder_block.19} parent=5 // pred_check_branch
      %173 = sbr.rel (%p170) target = $region12
    $region11: #{decoder_block.19} parent=5 // pred_region
      %s174 = ssub.s32 %s10, 1
    $region12: #{decoder_block.19} parent=5 // pred_fallthru
      _
    %p175 = scmp.lt.s32.totalorder %s10, 8
    // Predicated region
    $region13: #{decoder_block.19} parent=5 // pred_check
      %p176 = pneg %p175
    $region14: #{decoder_block.19} parent=5 // pred_check_branch
      %178 = sbr.rel (%p176) target = $region16
    $region15: #{decoder_block.19} parent=5 // pred_region
      // Predicated region
      $region17: #{decoder_block.19} parent=15 // pred_check
        %p179 = pneg %p44
      $region18: #{decoder_block.19} parent=15 // pred_check_branch
        %181 = sbr.rel (%p179) target = $region20
      $region19: #{decoder_block.19} parent=15 // pred_region
        %p182 = scmp.lt.s32.totalorder %s17, 1
        %s183 = scalar_select %p182, %s17, 1
        %p184 = scmp.lt.s32.totalorder %s18, 3
        %s185 = scalar_select %p184, %s18, 3
        %s186 = smul.addr %s183, 4
        %s187 = sadd.s32 %s185, %s186
        %s188 = smul.addr %s187, 8
        %s189 = scalar_lea.vmem %s0, %s188
      $region20: #{decoder_block.19} parent=15 // pred_fallthru
        _
      // Predicated region
      $region21: #{decoder_block.19} parent=15 // pred_check
        %p190 = pneg %p72
      $region22: #{decoder_block.19} parent=15 // pred_check_branch
        %192 = sbr.rel (%p190) target = $region24
      $region23: #{decoder_block.19} parent=15 // pred_region
        %p193 = scmp.lt.s32.totalorder %s17, 1
        %s194 = scalar_select %p193, %s17, 1
        %p195 = scmp.lt.s32.totalorder %s18, 3
        %s196 = scalar_select %p195, %s18, 3
        %s197 = smul.addr %s194, 4
        %s198 = sadd.s32 %s196, %s197
        %s199 = smul.addr %s198, 8
        %s200 = scalar_lea.vmem %s1, %s199
      $region24: #{decoder_block.19} parent=15 // pred_fallthru
        _
      // Predicated region
      $region25: #{decoder_block.19} parent=15 // pred_check
        %p201 = pneg %p100
      $region26: #{decoder_block.19} parent=15 // pred_check_branch
        %203 = sbr.rel (%p201) target = $region28
      $region27: #{decoder_block.19} parent=15 // pred_region
        %p204 = scmp.lt.s32.totalorder %s17, 1
        %s205 = scalar_select %p204, %s17, 1
        %p206 = scmp.lt.s32.totalorder %s18, 3
        %s207 = scalar_select %p206, %s18, 3
        %s208 = smul.addr %s205, 4
        %s209 = sadd.s32 %s207, %s208
        %s210 = smul.addr %s209, 8
        %s211 = scalar_lea.vmem %s2, %s210
      $region28: #{decoder_block.19} parent=15 // pred_fallthru
        _
      // Predicated region
      $region29: #{decoder_block.19} parent=15 // pred_check
        %p212 = pneg %p126
      $region30: #{decoder_block.19} parent=15 // pred_check_branch
        %214 = sbr.rel (%p212) target = $region32
      $region31: #{decoder_block.19} parent=15 // pred_region
        %p215 = scmp.lt.s32.totalorder %s17, 1
        %s216 = scalar_select %p215, %s17, 1
        %s217 = smul.addr %s216, 8
        %s218 = scalar_lea.vmem %s3, %s217
      $region32: #{decoder_block.19} parent=15 // pred_fallthru
        _
    $region16: #{decoder_block.19} parent=5 // pred_fallthru
      _
    %p219 = scmp.le.s32.totalorder 1, %s10
    %p220 = scmp.lt.s32.totalorder %s10, 9
    %p221 = pnand %p219, %p220
    %p222 = pneg %p221
    // Predicated region
    $region33: #{decoder_block.19} parent=5 // pred_check
      _
    $region34: #{decoder_block.19} parent=5 // pred_check_branch
      %224 = sbr.rel (%p221) target = $region36
    $region35: #{decoder_block.19} parent=5 // pred_region
      %s225 = ssub.s32 %s10, 1
      %p226 = scmp.lt.s32.totalorder %s19, 1
      %s227 = scalar_select %p226, %s19, 1
      %p228 = scmp.lt.s32.totalorder %s20, 3
      %s229 = scalar_select %p228, %s20, 3
      %s230 = smul.addr %s227, 4
      %s231 = sadd.s32 %s229, %s230
      %s232 = smul.addr %s231, 8
      %s233 = scalar_lea.vmem %s0, %s232
      %p234 = pneg %p50
      %p235 = pneg %p47
      %p236 = scmp.lt.s32.totalorder %s19, 1
      %s237 = scalar_select %p236, %s19, 1
      %p238 = scmp.lt.s32.totalorder %s20, 3
      %s239 = scalar_select %p238, %s20, 3
      %s240 = smul.addr %s237, 4
      %s241 = sadd.s32 %s239, %s240
      %s242 = smul.addr %s241, 8
      %s243 = scalar_lea.vmem %s1, %s242
      %p244 = pneg %p78
      %p245 = pneg %p75
      %p246 = scmp.lt.s32.totalorder %s19, 1
      %s247 = scalar_select %p246, %s19, 1
      %p248 = scmp.lt.s32.totalorder %s20, 3
      %s249 = scalar_select %p248, %s20, 3
      %s250 = smul.addr %s247, 4
      %s251 = sadd.s32 %s249, %s250
      %s252 = smul.addr %s251, 8
      %s253 = scalar_lea.vmem %s2, %s252
      %p254 = pneg %p106
      %p255 = pneg %p103
      %p256 = scmp.lt.s32.totalorder %s19, 1
      %s257 = scalar_select %p256, %s19, 1
      %s258 = smul.addr %s257, 8
      %s259 = scalar_lea.vmem %s3, %s258
      %p260 = pneg %p132
      %p261 = pneg %p129
      %p262 = pneg %p160
      %p263 = pneg %p157
      %p264 = scmp.lt.s32.totalorder %s19, 1
      %s265 = scalar_select %p264, %s19, 1
      %p266 = scmp.lt.s32.totalorder %s20, 3
      %s267 = scalar_select %p266, %s20, 3
      %s268 = smul.addr %s265, 4
      %s269 = sadd.s32 %s267, %s268
      %s270 = smul.addr %s269, 8
      %s271 = scalar_lea.vmem %s4, %s270
      %p272 = scmp.lt.s32.totalorder %s19, 1
      %s273 = scalar_select %p272, %s19, 1
      %p274 = scmp.lt.s32.totalorder %s20, 3
      %s275 = scalar_select %p274, %s20, 3
      %s276 = smul.addr %s273, 4
      %s277 = sadd.s32 %s275, %s276
      %s278 = smul.addr %s277, 8
      %s279 = scalar_lea.vmem %s0, %s278
      %p280 = scmp.lt.s32.totalorder %s19, 1
      %s281 = scalar_select %p280, %s19, 1
      %p282 = scmp.lt.s32.totalorder %s20, 3
      %s283 = scalar_select %p282, %s20, 3
      %s284 = smul.addr %s281, 4
      %s285 = sadd.s32 %s283, %s284
      %s286 = smul.addr %s285, 8
      %s287 = scalar_lea.vmem %s1, %s286
      %p288 = scmp.lt.s32.totalorder %s19, 1
      %s289 = scalar_select %p288, %s19, 1
      %p290 = scmp.lt.s32.totalorder %s20, 3
      %s291 = scalar_select %p290, %s20, 3
      %s292 = smul.addr %s289, 4
      %s293 = sadd.s32 %s291, %s292
      %s294 = smul.addr %s293, 8
      %s295 = scalar_lea.vmem %s2, %s294
      %p296 = scmp.lt.s32.totalorder %s19, 1
      %s297 = scalar_select %p296, %s19, 1
      %s298 = smul.addr %s297, 8
      %s299 = scalar_lea.vmem %s3, %s298
      %p300 = scmp.lt.s32.totalorder %s19, 1
      %s301 = scalar_select %p300, %s19, 1
      %p302 = scmp.lt.s32.totalorder %s20, 3
      %s303 = scalar_select %p302, %s20, 3
      %s304 = smul.addr %s301, 4
      %s305 = sadd.s32 %s303, %s304
      %s306 = smul.addr %s305, 8
      %s307 = scalar_lea.vmem %s4, %s306
      %v308 = vld [vmem:[%s279] sm:$0xff]
      %v309 = vld [vmem:[%s287] sm:$0xff]
      %v310 = vld [vmem:[%s295] sm:$0xff]
      %v311 = vld [vmem:[%s299] sm:$0xff]
      %vm312 = vcmask 261120
      %v314 = vsel %vm312, %v308, 0
      %v317 = vsel %vm312, %v309, 0
      %319 = vmatpush.xpose.msra.mxu0 0.0
      %320 = vmatpush.xpose.msra.mxu0 0.0
      %321 = vmatpush.xpose.msra.mxu0 0.0
      %322 = vmatpush.xpose.msra.mxu0 0.0
      %323 = vmatpush.xpose.msra.mxu0 0.0
      %324 = vmatpush.xpose.msra.mxu0 0.0
      %325 = vmatpush.xpose.msra.mxu0 0.0
      %326 = vmatpush.xpose.msra.mxu0 0.0
      %327 = vmatpush.xpose.msra.mxu0 0.0
      %328 = vmatpush.xpose.msra.mxu0 0.0
      %329 = vmatpush.xpose.msra.mxu0 0.0
      %330 = vmatpush.xpose.msra.mxu0 0.0
      %331 = vmatpush.xpose.msra.mxu0 0.0
      %332 = vmatpush.xpose.msra.mxu0 0.0
      %333 = vmatpush.xpose.msra.mxu0 0.0
      %334 = vmatpush.xpose.msra.mxu0 %v317
      %335 = vmatmul.f32.gmra.mxu0 %v314
      %v336 = vpop.f32.mrf.mxu0
      %v337 = vadd.f32 0.0, %v336
      %338 = vdwg.mxu0
      %v339 = vmul.f32 %v337, 0.17677669
      %vm340 = vcmp.eq.f32.partialorder %v311, 0.0
      %v341 = vsel %vm340, -1e+30, %v339
      %vm342 = vcmask 64512
      %v343 = vsel %vm342, %v341, -inf
      %344 = vmax.xlane.f32.xlu0 %v343
      %v345 = vpop.xlane.xlu0 %344
      %v346 = vsub.f32 %v341, %v345
      %v347 = vmul.f32 %v346, 1.442695
      %v348 = vpow.pop %v347
      %v349 = vsel %vm342, %v348, 0.0
      %350 = vadd.xlane.f32.xlu0 %v349
      %v351 = vpop.xlane.xlu0 %350
      %v352 = vrcp.pop %v351
      %v353 = vmul.f32 %v351, %v352
      %v354 = vsub.f32 1.0, %v353
      %v355 = vmul.f32 %v352, %v354
      %v356 = vadd.f32 %v352, %v355
      %vm357 = vweird.f32 %v351
      %vm358 = vweird.f32 %v352
      %vm359 = vmor %vm357, %vm358
      %v360 = vsel %vm359, %v352, %v356
      %v361 = vand.u32 2147483647, %v351
      %vm362 = vcmp.eq.f32.partialorder %v361, 8.507059e+37
      %v363 = vand.u32 %v351, 2147483648
      %v364 = vor.u32 1.1754944e-38, %v363
      %v365 = vsel %vm362, %v364, %v360
      %v366 = vmul.f32 %v348, %v365
      %v368 = vsel %vm342, %v366, 0
      %370 = vmatpush.msra.mxu0 0.0
      %371 = vmatpush.msra.mxu0 0.0
      %372 = vmatpush.msra.mxu0 0.0
      %373 = vmatpush.msra.mxu0 0.0
      %374 = vmatpush.msra.mxu0 0.0
      %375 = vmatpush.msra.mxu0 0.0
      %376 = vmatpush.msra.mxu0 0.0
      %377 = vmatpush.msra.mxu0 0.0
      %378 = vmatpush.msra.mxu0 0.0
      %379 = vmatpush.msra.mxu0 0.0
      %380 = vmatpush.msra.mxu0 0.0
      %381 = vmatpush.msra.mxu0 0.0
      %382 = vmatpush.msra.mxu0 0.0
      %383 = vmatpush.msra.mxu0 0.0
      %384 = vmatpush.msra.mxu0 0.0
      %385 = vmatpush.msra.mxu0 %v310
      %386 = vmatmul.f32.gmra.mxu0 %v368
      %v387 = vpop.f32.mrf.mxu0
      %v388 = vadd.f32 0.0, %v387
      %389 = vdwg.mxu0
      %390 = vst.msk [vmem:[%s307] sm:$0xff] %vm312, %v388
      %p391 = scmp.lt.s32.totalorder %s19, 1
      %s392 = scalar_select %p391, %s19, 1
      %p393 = scmp.lt.s32.totalorder %s20, 3
      %s394 = scalar_select %p393, %s20, 3
      %s395 = smul.addr %s392, 4
      %s396 = sadd.s32 %s394, %s395
      %s397 = smul.addr %s396, 8
      %s398 = scalar_lea.vmem %s4, %s397
      // Predicated region
      $region37: #{decoder_block.19} parent=35 // pred_check
        %p399 = pneg %p157
      $region38: #{decoder_block.19} parent=35 // pred_check_branch
        %401 = sbr.rel (%p399) target = $region40
      $region39: #{decoder_block.19} parent=35 // pred_region
        _
      $region40: #{decoder_block.19} parent=35 // pred_fallthru
        _
    $region36: #{decoder_block.19} parent=5 // pred_fallthru
      _
    %p402 = scmp.le.s32.totalorder 2, %s10
    // Predicated region
    $region41: #{decoder_block.19} parent=5 // pred_check
      %p403 = pneg %p402
    $region42: #{decoder_block.19} parent=5 // pred_check_branch
      %405 = sbr.rel (%p403) target = $region44
    $region43: #{decoder_block.19} parent=5 // pred_region
      %s406 = ssub.s32 %s10, 2
      // Predicated region
      $region45: #{decoder_block.19} parent=43 // pred_check
        %p407 = pneg %p163
      $region46: #{decoder_block.19} parent=43 // pred_check_branch
        %409 = sbr.rel (%p407) target = $region48
      $region47: #{decoder_block.19} parent=43 // pred_region
        %p410 = scmp.lt.s32.totalorder %s21, 1
        %s411 = scalar_select %p410, %s21, 1
        %p412 = scmp.lt.s32.totalorder %s22, 3
        %s413 = scalar_select %p412, %s22, 3
        %s414 = smul.addr %s411, 4
        %s415 = sadd.s32 %s413, %s414
        %s416 = smul.addr %s415, 8
        %s417 = scalar_lea.vmem %s4, %s416
      $region48: #{decoder_block.19} parent=43 // pred_fallthru
        _
    $region44: #{decoder_block.19} parent=5 // pred_fallthru
      _
  $region6: #{decoder_block.19} parent=0 // loop_footer
    %s14 = sadd.s32 1, %s10
  $region7: #{decoder_block.19} parent=0 // loop_footer_branch
    %9 = sbr.rel target = $region3
  $region8: #{decoder_block.19} parent=0 // loop_exit
    _

// kernel: decoder_block.20
$region0: #{decoder_block.20}
  #allocation0 [shape = 'u32[]', space=smem, size = 0x4, offset = 0x4, fixed_abs, tag = 'smem constant byte address 0x4 - core index']
  #allocation1 [shape = 'u32[72,128]{1,0:T(1,128)}', space=vmem, size = 0x9000, scoped, tag = 'internal scratch']
  #allocation2 [shape = 'f32[16,128]{1,0:T(8,128)}', space=vmem, size = 0x2000, scoped, tag = 'scratch operand']
  %s0 = inlined_call_operand.vmem [shape: f32[16,128], index: 0, kind: input, shape index: {}]
  %s1 = inlined_call_operand.vmem [shape: f32[128,128], index: 1, kind: input, shape index: {}]
  %s2 = inlined_call_operand.vmem [shape: f32[1,128], index: 2, kind: input, shape index: {}]
  %s3 = inlined_call_operand.vmem [shape: f32[16,128], index: 3, kind: input, shape index: {}]
  %s4 = inlined_call_operand.vmem [shape: f32[16,128], index: 4, kind: output, shape index: {}]
  %s5 = sld [smem:[#allocation0]]
  $region34: #{decoder_block.20} parent=0
    _
  %s7 = ssub.s32 1, %s5
  %s8 = scalar_select 0, %s7, %s5
  // Predicated region
  $region2: #{decoder_block.20} parent=0 // pred_check
    _
  $region3: #{decoder_block.20} parent=0 // pred_check_branch
    %10 = sbr.rel (0) target = $region5
  $region4: #{decoder_block.20} parent=0 // pred_region
    _
  $region5: #{decoder_block.20} parent=0 // pred_fallthru
    _
  // Predicated region
  $region6: #{decoder_block.20} parent=0 // pred_check
    _
  $region7: #{decoder_block.20} parent=0 // pred_check_branch
    %12 = sbr.rel (0) target = $region9
  $region8: #{decoder_block.20} parent=0 // pred_region
    _
  $region9: #{decoder_block.20} parent=0 // pred_fallthru
    _
  // Predicated region
  $region10: #{decoder_block.20} parent=0 // pred_check
    _
  $region11: #{decoder_block.20} parent=0 // pred_check_branch
    %14 = sbr.rel (0) target = $region13
  $region12: #{decoder_block.20} parent=0 // pred_region
    _
  $region13: #{decoder_block.20} parent=0 // pred_fallthru
    _
  // Predicated region
  $region14: #{decoder_block.20} parent=0 // pred_check
    _
  $region15: #{decoder_block.20} parent=0 // pred_check_branch
    %16 = sbr.rel (0) target = $region17
  $region16: #{decoder_block.20} parent=0 // pred_region
    _
  $region17: #{decoder_block.20} parent=0 // pred_fallthru
    _
  %p17 = scmp.eq.s32.totalorder 0, 0
  // Predicated region
  $region18: #{decoder_block.20} parent=0 // pred_check
    %p18 = pneg %p17
  $region19: #{decoder_block.20} parent=0 // pred_check_branch
    %20 = sbr.rel (%p18) target = $region21
  $region20: #{decoder_block.20} parent=0 // pred_region
    %21 = vst [vmem:[#allocation2] sm:$0xff] 0.0
    %22 = vst [vmem:[#allocation2 + $0x8] sm:$0xff] 0.0
  $region21: #{decoder_block.20} parent=0 // pred_fallthru
    _
  %v23 = vld [vmem:[#allocation2] sm:$0xff]
  %v24 = vld [vmem:[#allocation2 + $0x8] sm:$0xff]
  %v25 = vld [vmem:[%s0] sm:$0xff]
  %v26 = vld [vmem:[%s0 + $0x8] sm:$0xff]
  %v27 = vld [vmem:[%s1] sm:$0xff]
  %v28 = vld [vmem:[%s1 + $0x8] sm:$0xff]
  %v29 = vld [vmem:[%s1 + $0x10] sm:$0xff]
  %v30 = vld [vmem:[%s1 + $0x18] sm:$0xff]
  %v31 = vld [vmem:[%s1 + $0x20] sm:$0xff]
  %v32 = vld [vmem:[%s1 + $0x28] sm:$0xff]
  %v33 = vld [vmem:[%s1 + $0x30] sm:$0xff]
  %v34 = vld [vmem:[%s1 + $0x38] sm:$0xff]
  %v35 = vld [vmem:[%s1 + $0x40] sm:$0xff]
  %v36 = vld [vmem:[%s1 + $0x48] sm:$0xff]
  %v37 = vld [vmem:[%s1 + $0x50] sm:$0xff]
  %v38 = vld [vmem:[%s1 + $0x58] sm:$0xff]
  %v39 = vld [vmem:[%s1 + $0x60] sm:$0xff]
  %v40 = vld [vmem:[%s1 + $0x68] sm:$0xff]
  %v41 = vld [vmem:[%s1 + $0x70] sm:$0xff]
  %v42 = vld [vmem:[%s1 + $0x78] sm:$0xff]
  %43 = vmatpush.msra.mxu0 %v42
  %44 = vmatpush.msra.mxu0 %v41
  %45 = vmatpush.msra.mxu0 %v40
  %46 = vmatpush.msra.mxu0 %v39
  %47 = vmatpush.msra.mxu0 %v38
  %48 = vmatpush.msra.mxu0 %v37
  %49 = vmatpush.msra.mxu0 %v36
  %50 = vmatpush.msra.mxu0 %v35
  %51 = vmatpush.msra.mxu0 %v34
  %52 = vmatpush.msra.mxu0 %v33
  %53 = vmatpush.msra.mxu0 %v32
  %54 = vmatpush.msra.mxu0 %v31
  %55 = vmatpush.msra.mxu0 %v30
  %56 = vmatpush.msra.mxu0 %v29
  %57 = vmatpush.msra.mxu0 %v28
  %58 = vmatpush.msra.mxu0 %v27
  %59 = vmatmul.f32.gmra.mxu0 %v25
  %v60 = vpop.f32.mrf.mxu0
  %v61 = vadd.f32 0.0, %v60
  %62 = vmatmul.f32.gmra.mxu0 %v26
  %v63 = vpop.f32.mrf.mxu0
  %v64 = vadd.f32 0.0, %v63
  %65 = vdwg.mxu0
  %v66 = vadd.f32 %v23, %v61
  %v67 = vadd.f32 %v24, %v64
  %68 = vst [vmem:[#allocation2] sm:$0xff] %v66
  %69 = vst [vmem:[#allocation2 + $0x8] sm:$0xff] %v67
  // Predicated region
  $region22: #{decoder_block.20} parent=0 // pred_check
    %p70 = pneg %p17
  $region23: #{decoder_block.20} parent=0 // pred_check_branch
    %72 = sbr.rel (%p70) target = $region25
  $region24: #{decoder_block.20} parent=0 // pred_region
    %v73 = vld [vmem:[#allocation2] sm:$0xff]
    %v74 = vld [vmem:[#allocation2 + $0x8] sm:$0xff]
    %v75 = vld [vmem:[%s2] sm:$0x1]
    %v77 = vperm.slane %v75, 0
    %v79 = vadd.f32 %v73, %v77
    %v80 = vadd.f32 %v74, %v77
    %v81 = vld [vmem:[%s3] sm:$0xff]
    %v82 = vld [vmem:[%s3 + $0x8] sm:$0xff]
    %v83 = vadd.f32 %v79, %v81
    %v84 = vadd.f32 %v80, %v82
    %85 = vst [vmem:[%s4] sm:$0xff] %v83
    %86 = vst [vmem:[%s4 + $0x8] sm:$0xff] %v84
  $region25: #{decoder_block.20} parent=0 // pred_fallthru
    _
  // Predicated region
  $region26: #{decoder_block.20} parent=0 // pred_check
    _
  $region27: #{decoder_block.20} parent=0 // pred_check_branch
    %88 = sbr.rel (0) target = $region29
  $region28: #{decoder_block.20} parent=0 // pred_region
    _
  $region29: #{decoder_block.20} parent=0 // pred_fallthru
    _
  // Predicated region
  $region30: #{decoder_block.20} parent=0 // pred_check
    _
  $region31: #{decoder_block.20} parent=0 // pred_check_branch
    %90 = sbr.rel (0) target = $region33
  $region32: #{decoder_block.20} parent=0 // pred_region
    _
  $region33: #{decoder_block.20} parent=0 // pred_fallthru
    _

// kernel: decoder_block.29
$region0: #{decoder_block.29}
  #allocation0 [shape = 'u32[]', space=smem, size = 0x4, offset = 0x4, fixed_abs, tag = 'smem constant byte address 0x4 - core index']
  #allocation1 [shape = 'u32[72,128]{1,0:T(1,128)}', space=vmem, size = 0x9000, scoped, tag = 'internal scratch']
  #allocation2 [shape = 'f32[16,128]{1,0:T(8,128)}', space=vmem, size = 0x2000, scoped, tag = 'scratch operand']
  %s0 = inlined_call_operand.vmem [shape: f32[16,256], index: 0, kind: input, shape index: {}]
  %s1 = inlined_call_operand.vmem [shape: f32[256,128], index: 1, kind: input, shape index: {}]
  %s2 = inlined_call_operand.vmem [shape: f32[1,128], index: 2, kind: input, shape index: {}]
  %s3 = inlined_call_operand.vmem [shape: f32[16,128], index: 3, kind: input, shape index: {}]
  %s4 = inlined_call_operand.hbm [shape: f32[16,128], index: 4, kind: output, shape index: {}]
  %s5 = sld [smem:[#allocation0]]
  $region34: #{decoder_block.29} parent=0
    _
  %s7 = ssub.s32 1, %s5
  %s8 = scalar_select 0, %s7, %s5
  $region1: #{decoder_block.29} parent=0
    #allocation3 [shape = 'u8[8192]{0}', space=vmem, size = 0x2000, scoped, tag = 'output window, operand 0, single buffered']
    #allocation4 [shape = 's32[1]{0}', space=sflag, size = 0x4, scoped, tag = 'scoped memory for decoder_block.29']
    %9 = vsyncpa [#allocation4], 0
    // Predicated region
    $region2: #{decoder_block.29} parent=1 // pred_check
      _
    $region3: #{decoder_block.29} parent=1 // pred_check_branch
      %11 = sbr.rel (0) target = $region5
    $region4: #{decoder_block.29} parent=1 // pred_region
      _
    $region5: #{decoder_block.29} parent=1 // pred_fallthru
      _
    // Predicated region
    $region6: #{decoder_block.29} parent=1 // pred_check
      _
    $region7: #{decoder_block.29} parent=1 // pred_check_branch
      %13 = sbr.rel (0) target = $region9
    $region8: #{decoder_block.29} parent=1 // pred_region
      _
    $region9: #{decoder_block.29} parent=1 // pred_fallthru
      _
    // Predicated region
    $region10: #{decoder_block.29} parent=1 // pred_check
      _
    $region11: #{decoder_block.29} parent=1 // pred_check_branch
      %15 = sbr.rel (0) target = $region13
    $region12: #{decoder_block.29} parent=1 // pred_region
      _
    $region13: #{decoder_block.29} parent=1 // pred_fallthru
      _
    // Predicated region
    $region14: #{decoder_block.29} parent=1 // pred_check
      _
    $region15: #{decoder_block.29} parent=1 // pred_check_branch
      %17 = sbr.rel (0) target = $region17
    $region16: #{decoder_block.29} parent=1 // pred_region
      _
    $region17: #{decoder_block.29} parent=1 // pred_fallthru
      _
    %p18 = scmp.eq.s32.totalorder 0, 0
    // Predicated region
    $region18: #{decoder_block.29} parent=1 // pred_check
      %p19 = pneg %p18
    $region19: #{decoder_block.29} parent=1 // pred_check_branch
      %21 = sbr.rel (%p19) target = $region21
    $region20: #{decoder_block.29} parent=1 // pred_region
      %22 = vst [vmem:[#allocation2] sm:$0xff] 0.0
      %23 = vst [vmem:[#allocation2 + $0x8] sm:$0xff] 0.0
    $region21: #{decoder_block.29} parent=1 // pred_fallthru
      _
    %v24 = vld [vmem:[#allocation2] sm:$0xff]
    %v25 = vld [vmem:[#allocation2 + $0x8] sm:$0xff]
    %v26 = vld [vmem:[%s0] sm:$0xff]
    %v27 = vld [vmem:[%s0 + $0x8] sm:$0xff]
    %v28 = vld [vmem:[%s0 + $0x10] sm:$0xff]
    %v29 = vld [vmem:[%s0 + $0x18] sm:$0xff]
    %v30 = vld [vmem:[%s1] sm:$0xff]
    %v31 = vld [vmem:[%s1 + $0x8] sm:$0xff]
    %v32 = vld [vmem:[%s1 + $0x10] sm:$0xff]
    %v33 = vld [vmem:[%s1 + $0x18] sm:$0xff]
    %v34 = vld [vmem:[%s1 + $0x20] sm:$0xff]
    %v35 = vld [vmem:[%s1 + $0x28] sm:$0xff]
    %v36 = vld [vmem:[%s1 + $0x30] sm:$0xff]
    %v37 = vld [vmem:[%s1 + $0x38] sm:$0xff]
    %v38 = vld [vmem:[%s1 + $0x40] sm:$0xff]
    %v39 = vld [vmem:[%s1 + $0x48] sm:$0xff]
    %v40 = vld [vmem:[%s1 + $0x50] sm:$0xff]
    %v41 = vld [vmem:[%s1 + $0x58] sm:$0xff]
    %v42 = vld [vmem:[%s1 + $0x60] sm:$0xff]
    %v43 = vld [vmem:[%s1 + $0x68] sm:$0xff]
    %v44 = vld [vmem:[%s1 + $0x70] sm:$0xff]
    %v45 = vld [vmem:[%s1 + $0x78] sm:$0xff]
    %v46 = vld [vmem:[%s1 + $0x80] sm:$0xff]
    %v47 = vld [vmem:[%s1 + $0x88] sm:$0xff]
    %v48 = vld [vmem:[%s1 + $0x90] sm:$0xff]
    %v49 = vld [vmem:[%s1 + $0x98] sm:$0xff]
    %v50 = vld [vmem:[%s1 + $0xa0] sm:$0xff]
    %v51 = vld [vmem:[%s1 + $0xa8] sm:$0xff]
    %v52 = vld [vmem:[%s1 + $0xb0] sm:$0xff]
    %v53 = vld [vmem:[%s1 + $0xb8] sm:$0xff]
    %v54 = vld [vmem:[%s1 + $0xc0] sm:$0xff]
    %v55 = vld [vmem:[%s1 + $0xc8] sm:$0xff]
    %v56 = vld [vmem:[%s1 + $0xd0] sm:$0xff]
    %v57 = vld [vmem:[%s1 + $0xd8] sm:$0xff]
    %v58 = vld [vmem:[%s1 + $0xe0] sm:$0xff]
    %v59 = vld [vmem:[%s1 + $0xe8] sm:$0xff]
    %v60 = vld [vmem:[%s1 + $0xf0] sm:$0xff]
    %v61 = vld [vmem:[%s1 + $0xf8] sm:$0xff]
    %62 = vmatpush.msra.mxu0 %v45
    %63 = vmatpush.msra.mxu0 %v44
    %64 = vmatpush.msra.mxu0 %v43
    %65 = vmatpush.msra.mxu0 %v42
    %66 = vmatpush.msra.mxu0 %v41
    %67 = vmatpush.msra.mxu0 %v40
    %68 = vmatpush.msra.mxu0 %v39
    %69 = vmatpush.msra.mxu0 %v38
    %70 = vmatpush.msra.mxu0 %v37
    %71 = vmatpush.msra.mxu0 %v36
    %72 = vmatpush.msra.mxu0 %v35
    %73 = vmatpush.msra.mxu0 %v34
    %74 = vmatpush.msra.mxu0 %v33
    %75 = vmatpush.msra.mxu0 %v32
    %76 = vmatpush.msra.mxu0 %v31
    %77 = vmatpush.msra.mxu0 %v30
    %78 = vmatmul.f32.gmra.mxu0 %v26
    %v79 = vpop.f32.mrf.mxu0
    %v80 = vadd.f32 0.0, %v79
    %81 = vmatmul.f32.gmra.mxu0 %v28
    %v82 = vpop.f32.mrf.mxu0
    %v83 = vadd.f32 0.0, %v82
    %84 = vdwg.mxu0
    %85 = vmatpush.msra.mxu0 %v61
    %86 = vmatpush.msra.mxu0 %v60
    %87 = vmatpush.msra.mxu0 %v59
    %88 = vmatpush.msra.mxu0 %v58
    %89 = vmatpush.msra.mxu0 %v57
    %90 = vmatpush.msra.mxu0 %v56
    %91 = vmatpush.msra.mxu0 %v55
    %92 = vmatpush.msra.mxu0 %v54
    %93 = vmatpush.msra.mxu0 %v53
    %94 = vmatpush.msra.mxu0 %v52
    %95 = vmatpush.msra.mxu0 %v51
    %96 = vmatpush.msra.mxu0 %v50
    %97 = vmatpush.msra.mxu0 %v49
    %98 = vmatpush.msra.mxu0 %v48
    %99 = vmatpush.msra.mxu0 %v47
    %100 = vmatpush.msra.mxu0 %v46
    %101 = vmatmul.f32.gmra.mxu0 %v27
    %v102 = vpop.f32.mrf.mxu0
    %v103 = vadd.f32 %v80, %v102
    %104 = vmatmul.f32.gmra.mxu0 %v29
    %v105 = vpop.f32.mrf.mxu0
    %v106 = vadd.f32 %v83, %v105
    %107 = vdwg.mxu0
    %v108 = vadd.f32 %v24, %v103
    %v109 = vadd.f32 %v25, %v106
    %110 = vst [vmem:[#allocation2] sm:$0xff] %v108
    %111 = vst [vmem:[#allocation2 + $0x8] sm:$0xff] %v109
    // Predicated region
    $region22: #{decoder_block.29} parent=1 // pred_check
      %p112 = pneg %p18
    $region23: #{decoder_block.29} parent=1 // pred_check_branch
      %114 = sbr.rel (%p112) target = $region25
    $region24: #{decoder_block.29} parent=1 // pred_region
      %v115 = vld [vmem:[#allocation2] sm:$0xff]
      %v116 = vld [vmem:[#allocation2 + $0x8] sm:$0xff]
      %v117 = vld [vmem:[%s2] sm:$0x1]
      %v119 = vperm.slane %v117, 0
      %v121 = vadd.f32 %v115, %v119
      %v122 = vadd.f32 %v116, %v119
      %v123 = vld [vmem:[%s3] sm:$0xff]
      %v124 = vld [vmem:[%s3 + $0x8] sm:$0xff]
      %v125 = vadd.f32 %v121, %v123
      %v126 = vadd.f32 %v122, %v124
      %127 = vst [vmem:[#allocation3] sm:$0xff] %v125
      %128 = vst [vmem:[#allocation3 + $0x8] sm:$0xff] %v126
    $region25: #{decoder_block.29} parent=1 // pred_fallthru
      _
    // Predicated region
    $region26: #{decoder_block.29} parent=1 // pred_check
      _
    $region27: #{decoder_block.29} parent=1 // pred_check_branch
      %130 = sbr.rel (0) target = $region29
    $region28: #{decoder_block.29} parent=1 // pred_region
      %132 = vsyncadd [#allocation4], 0
      %s133 = sshll.u32 [#allocation3], 4
      %s134 = int_to_ptr.vmem [resolvable:$true] %s133
      %s135 = sshll.u32 %s4, 4
      %s136 = int_to_ptr.hbm [resolvable:$true] %s135
      %141 = dma.vmem_to_hbm [thread:$0]  %s134, 256, %s136, [#allocation4], 128, 128, 8
    $region29: #{decoder_block.29} parent=1 // pred_fallthru
      _
    // Predicated region
    $region30: #{decoder_block.29} parent=1 // pred_check
      _
    $region31: #{decoder_block.29} parent=1 // pred_check_branch
      %143 = sbr.rel (0) target = $region33
    $region32: #{decoder_block.29} parent=1 // pred_region
      %145 = dma.done [#allocation4], 256
    $region33: #{decoder_block.29} parent=1 // pred_fallthru
      _
    %146 = vsyncpa [#allocation4], 1

// kernel: decoder_block.28
$region0: #{decoder_block.28}
  #allocation0 [shape = 'u32[]', space=smem, size = 0x4, offset = 0x4, fixed_abs, tag = 'smem constant byte address 0x4 - core index']
  #allocation1 [shape = 'u32[72,128]{1,0:T(1,128)}', space=vmem, size = 0x9000, scoped, tag = 'internal scratch']
  #allocation2 [shape = 'f32[16,256]{1,0:T(8,128)}', space=vmem, size = 0x4000, scoped, tag = 'scratch operand']
  %s0 = inlined_call_operand.vmem [shape: f32[16,128], index: 0, kind: input, shape index: {}]
  %s1 = inlined_call_operand.vmem [shape: f32[128,256], index: 1, kind: input, shape index: {}]
  %s2 = inlined_call_operand.vmem [shape: f32[1,256], index: 2, kind: input, shape index: {}]
  %s3 = inlined_call_operand.vmem [shape: f32[16,256], index: 3, kind: output, shape index: {}]
  %s4 = sld [smem:[#allocation0]]
  $region30: #{decoder_block.28} parent=0
    _
  %s6 = ssub.s32 1, %s4
  %s7 = scalar_select 0, %s6, %s4
  // Predicated region
  $region2: #{decoder_block.28} parent=0 // pred_check
    _
  $region3: #{decoder_block.28} parent=0 // pred_check_branch
    %9 = sbr.rel (0) target = $region5
  $region4: #{decoder_block.28} parent=0 // pred_region
    _
  $region5: #{decoder_block.28} parent=0 // pred_fallthru
    _
  // Predicated region
  $region6: #{decoder_block.28} parent=0 // pred_check
    _
  $region7: #{decoder_block.28} parent=0 // pred_check_branch
    %11 = sbr.rel (0) target = $region9
  $region8: #{decoder_block.28} parent=0 // pred_region
    _
  $region9: #{decoder_block.28} parent=0 // pred_fallthru
    _
  // Predicated region
  $region10: #{decoder_block.28} parent=0 // pred_check
    _
  $region11: #{decoder_block.28} parent=0 // pred_check_branch
    %13 = sbr.rel (0) target = $region13
  $region12: #{decoder_block.28} parent=0 // pred_region
    _
  $region13: #{decoder_block.28} parent=0 // pred_fallthru
    _
  %p14 = scmp.eq.s32.totalorder 0, 0
  // Predicated region
  $region14: #{decoder_block.28} parent=0 // pred_check
    %p15 = pneg %p14
  $region15: #{decoder_block.28} parent=0 // pred_check_branch
    %17 = sbr.rel (%p15) target = $region17
  $region16: #{decoder_block.28} parent=0 // pred_region
    %18 = vst [vmem:[#allocation2] sm:$0xff] 0.0
    %19 = vst [vmem:[#allocation2 + $0x8] sm:$0xff] 0.0
    %20 = vst [vmem:[#allocation2 + $0x10] sm:$0xff] 0.0
    %21 = vst [vmem:[#allocation2 + $0x18] sm:$0xff] 0.0
  $region17: #{decoder_block.28} parent=0 // pred_fallthru
    _
  %v22 = vld [vmem:[#allocation2] sm:$0xff]
  %v23 = vld [vmem:[#allocation2 + $0x8] sm:$0xff]
  %v24 = vld [vmem:[#allocation2 + $0x10] sm:$0xff]
  %v25 = vld [vmem:[#allocation2 + $0x18] sm:$0xff]
  %v26 = vld [vmem:[%s0] sm:$0xff]
  %v27 = vld [vmem:[%s0 + $0x8] sm:$0xff]
  %v28 = vld [vmem:[%s1] sm:$0xff]
  %v29 = vld [vmem:[%s1 + $0x8] sm:$0xff]
  %v30 = vld [vmem:[%s1 + $0x10] sm:$0xff]
  %v31 = vld [vmem:[%s1 + $0x18] sm:$0xff]
  %v32 = vld [vmem:[%s1 + $0x20] sm:$0xff]
  %v33 = vld [vmem:[%s1 + $0x28] sm:$0xff]
  %v34 = vld [vmem:[%s1 + $0x30] sm:$0xff]
  %v35 = vld [vmem:[%s1 + $0x38] sm:$0xff]
  %v36 = vld [vmem:[%s1 + $0x40] sm:$0xff]
  %v37 = vld [vmem:[%s1 + $0x48] sm:$0xff]
  %v38 = vld [vmem:[%s1 + $0x50] sm:$0xff]
  %v39 = vld [vmem:[%s1 + $0x58] sm:$0xff]
  %v40 = vld [vmem:[%s1 + $0x60] sm:$0xff]
  %v41 = vld [vmem:[%s1 + $0x68] sm:$0xff]
  %v42 = vld [vmem:[%s1 + $0x70] sm:$0xff]
  %v43 = vld [vmem:[%s1 + $0x78] sm:$0xff]
  %v44 = vld [vmem:[%s1 + $0x80] sm:$0xff]
  %v45 = vld [vmem:[%s1 + $0x88] sm:$0xff]
  %v46 = vld [vmem:[%s1 + $0x90] sm:$0xff]
  %v47 = vld [vmem:[%s1 + $0x98] sm:$0xff]
  %v48 = vld [vmem:[%s1 + $0xa0] sm:$0xff]
  %v49 = vld [vmem:[%s1 + $0xa8] sm:$0xff]
  %v50 = vld [vmem:[%s1 + $0xb0] sm:$0xff]
  %v51 = vld [vmem:[%s1 + $0xb8] sm:$0xff]
  %v52 = vld [vmem:[%s1 + $0xc0] sm:$0xff]
  %v53 = vld [vmem:[%s1 + $0xc8] sm:$0xff]
  %v54 = vld [vmem:[%s1 + $0xd0] sm:$0xff]
  %v55 = vld [vmem:[%s1 + $0xd8] sm:$0xff]
  %v56 = vld [vmem:[%s1 + $0xe0] sm:$0xff]
  %v57 = vld [vmem:[%s1 + $0xe8] sm:$0xff]
  %v58 = vld [vmem:[%s1 + $0xf0] sm:$0xff]
  %v59 = vld [vmem:[%s1 + $0xf8] sm:$0xff]
  %60 = vmatpush.msra.mxu0 %v58
  %61 = vmatpush.msra.mxu0 %v56
  %62 = vmatpush.msra.mxu0 %v54
  %63 = vmatpush.msra.mxu0 %v52
  %64 = vmatpush.msra.mxu0 %v50
  %65 = vmatpush.msra.mxu0 %v48
  %66 = vmatpush.msra.mxu0 %v46
  %67 = vmatpush.msra.mxu0 %v44
  %68 = vmatpush.msra.mxu0 %v42
  %69 = vmatpush.msra.mxu0 %v40
  %70 = vmatpush.msra.mxu0 %v38
  %71 = vmatpush.msra.mxu0 %v36
  %72 = vmatpush.msra.mxu0 %v34
  %73 = vmatpush.msra.mxu0 %v32
  %74 = vmatpush.msra.mxu0 %v30
  %75 = vmatpush.msra.mxu0 %v28
  %76 = vmatmul.f32.gmra.mxu0 %v26
  %v77 = vpop.f32.mrf.mxu0
  %v78 = vadd.f32 0.0, %v77
  %79 = vmatmul.f32.gmra.mxu0 %v27
  %v80 = vpop.f32.mrf.mxu0
  %v81 = vadd.f32 0.0, %v80
  %82 = vdwg.mxu0
  %83 = vmatpush.msra.mxu0 %v59
  %84 = vmatpush.msra.mxu0 %v57
  %85 = vmatpush.msra.mxu0 %v55
  %86 = vmatpush.msra.mxu0 %v53
  %87 = vmatpush.msra.mxu0 %v51
  %88 = vmatpush.msra.mxu0 %v49
  %89 = vmatpush.msra.mxu0 %v47
  %90 = vmatpush.msra.mxu0 %v45
  %91 = vmatpush.msra.mxu0 %v43
  %92 = vmatpush.msra.mxu0 %v41
  %93 = vmatpush.msra.mxu0 %v39
  %94 = vmatpush.msra.mxu0 %v37
  %95 = vmatpush.msra.mxu0 %v35
  %96 = vmatpush.msra.mxu0 %v33
  %97 = vmatpush.msra.mxu0 %v31
  %98 = vmatpush.msra.mxu0 %v29
  %99 = vmatmul.f32.gmra.mxu0 %v26
  %v100 = vpop.f32.mrf.mxu0
  %v101 = vadd.f32 0.0, %v100
  %102 = vmatmul.f32.gmra.mxu0 %v27
  %v103 = vpop.f32.mrf.mxu0
  %v104 = vadd.f32 0.0, %v103
  %105 = vdwg.mxu0
  %v106 = vadd.f32 %v22, %v78
  %v107 = vadd.f32 %v23, %v101
  %v108 = vadd.f32 %v24, %v81
  %v109 = vadd.f32 %v25, %v104
  %110 = vst [vmem:[#allocation2] sm:$0xff] %v106
  %111 = vst [vmem:[#allocation2 + $0x8] sm:$0xff] %v107
  %112 = vst [vmem:[#allocation2 + $0x10] sm:$0xff] %v108
  %113 = vst [vmem:[#allocation2 + $0x18] sm:$0xff] %v109
  // Predicated region
  $region18: #{decoder_block.28} parent=0 // pred_check
    %p114 = pneg %p14
  $region19: #{decoder_block.28} parent=0 // pred_check_branch
    %116 = sbr.rel (%p114) target = $region21
  $region20: #{decoder_block.28} parent=0 // pred_region
    %v117 = vld [vmem:[#allocation2] sm:$0xff]
    %v118 = vld [vmem:[#allocation2 + $0x8] sm:$0xff]
    %v119 = vld [vmem:[#allocation2 + $0x10] sm:$0xff]
    %v120 = vld [vmem:[#allocation2 + $0x18] sm:$0xff]
    %v121 = vld [vmem:[%s2] sm:$0x3]
    %v123 = vperm.slane %v121, 0
    %v124 = vperm.slane %v121, 1
    %v127 = vadd.f32 %v117, %v123
    %v128 = vadd.f32 %v118, %v124
    %v129 = vadd.f32 %v119, %v123
    %v130 = vadd.f32 %v120, %v124
    %v131 = vmax.f32 %v127, 0.0
    %v132 = vmax.f32 %v128, 0.0
    %v133 = vmax.f32 %v129, 0.0
    %v134 = vmax.f32 %v130, 0.0
    %135 = vst [vmem:[%s3] sm:$0xff] %v131
    %136 = vst [vmem:[%s3 + $0x8] sm:$0xff] %v132
    %137 = vst [vmem:[%s3 + $0x10] sm:$0xff] %v133
    %138 = vst [vmem:[%s3 + $0x18] sm:$0xff] %v134
  $region21: #{decoder_block.28} parent=0 // pred_fallthru
    _
  // Predicated region
  $region22: #{decoder_block.28} parent=0 // pred_check
    _
  $region23: #{decoder_block.28} parent=0 // pred_check_branch
    %140 = sbr.rel (0) target = $region25
  $region24: #{decoder_block.28} parent=0 // pred_region
    _
  $region25: #{decoder_block.28} parent=0 // pred_fallthru
    _
  // Predicated region
  $region26: #{decoder_block.28} parent=0 // pred_check
    _
  $region27: #{decoder_block.28} parent=0 // pred_check_branch
    %142 = sbr.rel (0) target = $region29
  $region28: #{decoder_block.28} parent=0 // pred_region
    _
  $region29: #{decoder_block.28} parent=0 // pred_fallthru
    _

</llo_original>
